<compile_context>
chip_gen: v5e
topology: v5e:2x2
jax: 0.10.0
libtpu: 0.0.40
codegen_flags: <defaults>
</compile_context>

<pallas_src>
import functools

import jax
import jax.numpy as jnp
from jax.experimental import pallas as pl
from jax.experimental.pallas import tpu as pltpu


# ------------------------------ helpers -------------------------------------

def _vmem_limit(bytes_needed):
    # Explicit scoped-VMEM limit: v5e defaults to 16 MiB and v6e/v7x to
    # 32 MiB; keep it big enough for the chosen block but well below v7x's
    # 64 MiB physical VMEM.
    return int(min(max(32 << 20, bytes_needed + (8 << 20)), 56 << 20))


def _pick_block_batch(B, per_elem_bytes, budget_bytes, cap=8):
    """Largest divisor of B (<= cap) whose working set fits the VMEM budget.

    Keeps >= 2 grid steps when B > 1 so a megacore part (v7x) can shard the
    "parallel" batch axis across TensorCores; on single-core parts the extra
    grid step costs ~0.35 us only.
    """
    best = 1
    for cand in range(1, min(B, cap) + 1):
        if B % cand:
            continue
        if cand * per_elem_bytes > budget_bytes:
            continue
        if cand == B and B > 1:
            continue
        best = cand
    return best


# --------------------------- Path A: depthwise ------------------------------

def _skconv_dw_kernel(x_ref, w1_ref, w2_ref, b1_ref, b2_ref,
                      wfc1_ref, bf_ref, wfc2_ref,
                      o_ref, xp_ref, *, H, W, C, PAD):
    WC = W * C
    Bblk = x_ref.shape[0]
    WpC = (W + 2 * PAD) * C

    # In-kernel zero padding: zero only the halo strips (the interior is
    # fully overwritten right below).  Re-done every step so the kernel stays
    # correct when the parallel batch axis is sharded across TensorCores.
    zrow = jnp.zeros((Bblk, PAD, WpC), jnp.float32)
    xp_ref[:, 0:PAD, :] = zrow
    xp_ref[:, PAD + H:, :] = zrow
    zcol = jnp.zeros((Bblk, H, PAD * C), jnp.float32)
    xp_ref[:, PAD:PAD + H, 0:PAD * C] = zcol
    xp_ref[:, PAD:PAD + H, PAD * C + WC:] = zcol
    xp_ref[:, PAD:PAD + H, PAD * C:PAD * C + WC] = x_ref[...]

    def branch(w_ref, dil, b_ref):
        w = w_ref[...]                               # (3, 3, W*C), BN scale pre-folded
        acc = None
        for kh in range(3):
            dy = PAD + dil * (kh - 1)
            # One band load per kh; the W-shifts are lane slices of the value
            # (no re-reading 3 misaligned VMEM windows per band).
            band = xp_ref[:, dy:dy + H, :]           # (Bblk, H, WpC)
            for kw in range(3):
                dx = (PAD + dil * (kw - 1)) * C      # W-shift == C-lane shift
                term = band[:, :, dx:dx + WC] * w[kh, kw]
                acc = term if acc is None else acc + term
        # folded-BN bias + ReLU (scale already folded into the weights)
        return jnp.maximum(acc + b_ref[...], 0.0)

    o1 = branch(w1_ref, 1, b1_ref)                   # (Bblk, H, W*C)
    o2 = branch(w2_ref, 2, b2_ref)

    # Global average pool over (H, W) per channel.  Sum over H (sublane
    # reduce), then accumulate the W lane slices -- no lane->sublane reshape.
    u = o1 + o2
    s_hw = jnp.sum(u, axis=1)                        # (Bblk, W*C)
    s = s_hw[:, 0:C]
    for wdx in range(1, W):
        s = s + s_hw[:, wdx * C:(wdx + 1) * C]
    s = s * (1.0 / (H * W))                          # (Bblk, C)

    # fc1 (1x1 conv, BN scale folded into the weight) + bias + ReLU
    z = jnp.dot(s, wfc1_ref[...], preferred_element_type=jnp.float32)
    z = jnp.maximum(z + bf_ref[...], 0.0)

    # fc2 + softmax over the M=2 branch axis (written as a sigmoid)
    logits = jnp.dot(z, wfc2_ref[...], preferred_element_type=jnp.float32)  # (Bblk, 2C)
    a0 = 1.0 / (1.0 + jnp.exp(logits[:, C:] - logits[:, :C]))               # (Bblk, C)

    a0t = jnp.tile(a0, (1, W))[:, None, :]           # (Bblk, 1, W*C)
    o_ref[...] = (o2 + a0t * (o1 - o2)).astype(o_ref.dtype)


def _skconv_depthwise_nhwc(x_nhwc, raw, *, block_batch=None):
    B, H, W, C = x_nhwc.shape
    d = raw["wfc1_t"].shape[0]
    PAD = 2
    WC = W * C
    Hp, WpC = H + 2 * PAD, (W + 2 * PAD) * C

    # NHWC -> (B, H, W*C): a free (row-major) reshape, no HBM transpose/pad.
    # NOTE: the output store is fully lane-dense only when W*C % 128 == 0.
    x = x_nhwc.reshape(B, H, WC).astype(jnp.float32)

    # Fold the eval-mode BN scale into the conv / fc1 weights at trace time.
    def tile_w(w, s):                                # (C,1,3,3) -> (3,3,W*C)
        w = jnp.transpose(w[:, 0], (1, 2, 0)) * s    # (3,3,C) * per-channel scale
        return jnp.tile(w, (1, 1, W)).astype(jnp.float32)

    def tile_v(v):                                   # (C,) -> (1, W*C)
        return jnp.tile(v, (W,)).reshape(1, WC).astype(jnp.float32)

    w1t = tile_w(raw["w1"], raw["bn1_s"])
    w2t = tile_w(raw["w2"], raw["bn2_s"])
    b1, b2 = tile_v(raw["bn1_b"]), tile_v(raw["bn2_b"])
    wfc1 = (raw["wfc1_t"].T * raw["bnf_s"][None, :]).astype(jnp.float32)     # (C, d)
    bf = raw["bnf_b"].reshape(1, d).astype(jnp.float32)
    wfc2 = raw["wfc2_t"].T.astype(jnp.float32)                               # (d, 2C)

    # VMEM budget: double-buffered in/out blocks + the padded scratch.
    fixed_bytes = 4 * (2 * 9 * WC + 2 * WC + C * d + d + d * 2 * C)
    per_elem_bytes = 4 * (4 * H * WC + Hp * WpC)
    if block_batch is None:
        block_batch = _pick_block_batch(B, per_elem_bytes,
                                        (40 << 20) - fixed_bytes)
    assert B % block_batch == 0
    grid = B // block_batch
    vmem_limit = _vmem_limit(fixed_bytes + block_batch * per_elem_bytes)

    kern = functools.partial(_skconv_dw_kernel, H=H, W=W, C=C, PAD=PAD)

    def full(shape):
        return pl.BlockSpec(shape, lambda b: (0,) * len(shape))

    grid_spec = pltpu.PrefetchScalarGridSpec(
        num_scalar_prefetch=0,
        grid=(grid,),
        in_specs=[
            pl.BlockSpec((block_batch, H, WC), lambda b: (b, 0, 0)),
            full((3, 3, WC)), full((3, 3, WC)),
            full((1, WC)), full((1, WC)),
            full((C, d)), full((1, d)), full((d, 2 * C)),
        ],
        out_specs=pl.BlockSpec((block_batch, H, WC), lambda b: (b, 0, 0)),
        scratch_shapes=[pltpu.VMEM((block_batch, Hp, WpC), jnp.float32)],
    )

    out = pl.pallas_call(
        kern,
        out_shape=jax.ShapeDtypeStruct((B, H, WC), jnp.float32),
        grid_spec=grid_spec,
        compiler_params=pltpu.CompilerParams(
            dimension_semantics=("parallel",),
            vmem_limit_bytes=vmem_limit),
    )(x, w1t, w2t, b1, b2, wfc1, bf, wfc2)

    return out.reshape(B, H, W, C)                   # free reshape, stays NHWC


# ------------------------ Path B: general grouped conv ----------------------

def _skconv_grouped_kernel(x_ref, w1_ref, w2_ref, b1_ref, b2_ref,
                           wfc1_ref, bf_ref, wfc2_ref,
                           o_ref, xp_ref, *, H, W, C_in, C_out, PAD):
    Bblk = x_ref.shape[0]
    Wp = W + 2 * PAD
    M = Bblk * H * W

    # In-kernel zero padding (halo strips only; interior overwritten below).
    zrow = jnp.zeros((Bblk, PAD, Wp, C_in), jnp.float32)
    xp_ref[:, 0:PAD, :, :] = zrow
    xp_ref[:, PAD + H:, :, :] = zrow
    zcol = jnp.zeros((Bblk, H, PAD, C_in), jnp.float32)
    xp_ref[:, PAD:PAD + H, 0:PAD, :] = zcol
    xp_ref[:, PAD:PAD + H, PAD + W:, :] = zcol
    xp_ref[:, PAD:PAD + H, PAD:PAD + W, :] = x_ref[...]

    xp = xp_ref[...]                                 # (Bblk, Hp, Wp, C_in)

    def branch(w_ref, dil, b_ref):
        # 9 per-tap MXU matmuls accumulated in f32 -- no materialized im2col
        # patch, no concatenate.  Operands in bf16, accumulation in f32.
        acc = None
        for kh in range(3):
            for kw in range(3):
                t = kh * 3 + kw
                dy = PAD + dil * (kh - 1)
                dx = PAD + dil * (kw - 1)
                tap = xp[:, dy:dy + H, dx:dx + W, :].reshape(M, C_in)
                part = jnp.dot(tap.astype(jnp.bfloat16), w_ref[t],
                               preferred_element_type=jnp.float32)
                acc = part if acc is None else acc + part
        return jnp.maximum(acc + b_ref[...], 0.0)    # folded-BN bias + ReLU

    o1 = branch(w1_ref, 1, b1_ref)                   # (M, C_out)
    o2 = branch(w2_ref, 2, b2_ref)

    u = (o1 + o2).reshape(Bblk, H * W, C_out)
    s = jnp.sum(u, axis=1) * (1.0 / (H * W))         # (Bblk, C_out)
    z = jnp.dot(s, wfc1_ref[...], preferred_element_type=jnp.float32)
    z = jnp.maximum(z + bf_ref[...], 0.0)
    logits = jnp.dot(z, wfc2_ref[...], preferred_element_type=jnp.float32)  # (Bblk, 2*C_out)
    a0 = 1.0 / (1.0 + jnp.exp(logits[:, C_out:] - logits[:, :C_out]))       # (Bblk, C_out)

    o1r = o1.reshape(Bblk, H * W, C_out)
    o2r = o2.reshape(Bblk, H * W, C_out)
    # TODO(synk): output last dim C_out (<128) lowers to masked stores; a
    # lane-dense (Bblk, H, W*C_out) layout needs a lane-expanding reshape.
    o_ref[...] = (o2r + a0[:, None, :] * (o1r - o2r)).astype(o_ref.dtype)


def _expand_grouped(w, bn_s, c_in, c_out, groups):
    # PyTorch grouped weight (C_out, C_in/G, 3, 3) -> dense block-diag
    # (9, C_in, C_out) with the eval-mode BN scale folded along C_out.
    # TODO(synk): the dense block-diagonal form pays a Gx MXU-FLOP / VMEM tax;
    # a per-group VPU formulation would avoid it for small group sizes.
    cg_in = c_in // groups
    cg_out = c_out // groups
    wt = jnp.transpose(w, (2, 3, 1, 0)) * bn_s       # (3, 3, cg_in, C_out)
    dense = jnp.zeros((3, 3, c_in, c_out), jnp.float32)
    for g in range(groups):
        dense = dense.at[:, :, g * cg_in:(g + 1) * cg_in,
                         g * cg_out:(g + 1) * cg_out].set(
            wt[:, :, :, g * cg_out:(g + 1) * cg_out])
    return dense.reshape(9, c_in, c_out).astype(jnp.bfloat16)


def _skconv_grouped_nhwc(x_nhwc, raw, *, block_batch=None):
    B, H, W, C_in = x_nhwc.shape
    G = raw["G"]
    C_out = raw["w1"].shape[0]
    d = raw["wfc1_t"].shape[0]
    PAD = 2
    Hp, Wp = H + 2 * PAD, W + 2 * PAD

    x = x_nhwc.astype(jnp.float32)                   # no wrapper pad / transpose

    w1 = _expand_grouped(raw["w1"], raw["bn1_s"], C_in, C_out, G)
    w2 = _expand_grouped(raw["w2"], raw["bn2_s"], C_in, C_out, G)
    b1 = raw["bn1_b"].reshape(1, C_out).astype(jnp.float32)
    b2 = raw["bn2_b"].reshape(1, C_out).astype(jnp.float32)
    wfc1 = (raw["wfc1_t"].T * raw["bnf_s"][None, :]).astype(jnp.float32)     # (C_out, d)
    bf = raw["bnf_b"].reshape(1, d).astype(jnp.float32)
    wfc2 = raw["wfc2_t"].T.astype(jnp.float32)                               # (d, 2*C_out)

    fixed_bytes = 2 * (2 * 9 * C_in * C_out) + 4 * (2 * C_out + C_out * d + d + d * 2 * C_out)
    per_elem_bytes = 4 * (2 * H * W * C_in + Hp * Wp * C_in + 2 * H * W * C_out)
    if block_batch is None:
        # Fatten the MXU M dimension (Bblk*H*W) toward >= 256 rows.
        budget = (40 << 20) - fixed_bytes
        block_batch = 1
        for cand in range(1, min(B, 8) + 1):
            if B % cand or cand * per_elem_bytes > budget:
                continue
            block_batch = cand
            if cand * H * W >= 256:
                break
    assert B % block_batch == 0
    grid = B // block_batch
    vmem_limit = _vmem_limit(fixed_bytes + block_batch * per_elem_bytes)

    kern = functools.partial(_skconv_grouped_kernel, H=H, W=W,
                             C_in=C_in, C_out=C_out, PAD=PAD)

    def full(shape):
        return pl.BlockSpec(shape, lambda b: (0,) * len(shape))

    grid_spec = pltpu.PrefetchScalarGridSpec(
        num_scalar_prefetch=0,
        grid=(grid,),
        in_specs=[
            pl.BlockSpec((block_batch, H, W, C_in), lambda b: (b, 0, 0, 0)),
            full((9, C_in, C_out)), full((9, C_in, C_out)),
            full((1, C_out)), full((1, C_out)),
            full((C_out, d)), full((1, d)), full((d, 2 * C_out)),
        ],
        out_specs=pl.BlockSpec((block_batch, H * W, C_out), lambda b: (b, 0, 0)),
        scratch_shapes=[pltpu.VMEM((block_batch, Hp, Wp, C_in), jnp.float32)],
    )

    out = pl.pallas_call(
        kern,
        out_shape=jax.ShapeDtypeStruct((B, H * W, C_out), jnp.float32),
        grid_spec=grid_spec,
        compiler_params=pltpu.CompilerParams(
            dimension_semantics=("parallel",),
            vmem_limit_bytes=vmem_limit),
    )(x, w1, w2, b1, b2, wfc1, bf, wfc2)

    return out.reshape(B, H, W, C_out)               # free reshape, stays NHWC


# --------------------------------- dispatch ---------------------------------

def skconv_pallas_nhwc(x_nhwc, raw, *, block_batch=None):
    """Layout-native entry point: NHWC in, NHWC out (no HBM transposes)."""
    C_in = x_nhwc.shape[-1]
    G = raw["G"]
    C_out = raw["w1"].shape[0]
    if C_in % G == 0 and C_in // G == 1 and C_out == C_in:
        return _skconv_depthwise_nhwc(x_nhwc, raw, block_batch=block_batch)
    return _skconv_grouped_nhwc(x_nhwc, raw, block_batch=block_batch)


def skconv_pallas(x_nchw, raw, *, block_batch=None):
    """NCHW compatibility shim (mirrors the PyTorch module's layout).

    The transposes here are outside the kernel; prefer skconv_pallas_nhwc to
    avoid the extra HBM round trips in a real pipeline.
    """
    x_nhwc = jnp.transpose(x_nchw, (0, 2, 3, 1))
    out = skconv_pallas_nhwc(x_nhwc, raw, block_batch=block_batch)
    return jnp.transpose(out, (0, 3, 1, 2))


# ----------------------------- parameter setup ------------------------------

def _fold_bn(kg, kb, km, kv, n):
    gamma = 1.0 + 0.1 * jax.random.normal(kg, (n,), jnp.float32)
    beta = 0.1 * jax.random.normal(kb, (n,), jnp.float32)
    mean = 0.1 * jax.random.normal(km, (n,), jnp.float32)
    var = jnp.abs(jax.random.normal(kv, (n,), jnp.float32)) + 0.5
    scale = gamma / jnp.sqrt(var + 1e-5)
    bias = beta - mean * scale
    return scale, bias


def init_params(key, in_channels, out_channels, M=2, r=16, L=32, groups=32):
    d = max(in_channels // r, L)
    ks = jax.random.split(key, 16)
    cg_in = in_channels // groups

    w1 = 0.1 * jax.random.normal(ks[0], (out_channels, cg_in, 3, 3), jnp.float32)
    w2 = 0.1 * jax.random.normal(ks[1], (out_channels, cg_in, 3, 3), jnp.float32)
    bn1_s, bn1_b = _fold_bn(ks[2], ks[3], ks[4], ks[5], out_channels)
    bn2_s, bn2_b = _fold_bn(ks[6], ks[7], ks[8], ks[9], out_channels)
    wfc1_t = 0.1 * jax.random.normal(ks[10], (d, out_channels), jnp.float32)      # torch (d,C,1,1)
    bnf_s, bnf_b = _fold_bn(ks[11], ks[12], ks[13], ks[14], d)
    wfc2_t = 0.1 * jax.random.normal(ks[15], (M * out_channels, d), jnp.float32)  # torch (M*C,d,1,1)

    return dict(w1=w1, w2=w2, bn1_s=bn1_s, bn1_b=bn1_b, bn2_s=bn2_s, bn2_b=bn2_b,
                wfc1_t=wfc1_t, bnf_s=bnf_s, bnf_b=bnf_b, wfc2_t=wfc2_t, G=groups)


# ------------------------------ pure-JAX reference ---------------------------

def skconv_ref(x_nchw, raw, M=2):
    B, C_in, H, W = x_nchw.shape
    C_out = raw["w1"].shape[0]
    outs = []
    for i, (w, s, b) in enumerate([(raw["w1"], raw["bn1_s"], raw["bn1_b"]),
                                   (raw["w2"], raw["bn2_s"], raw["bn2_b"])]):
        dil = i + 1
        y = jax.lax.conv_general_dilated(
            x_nchw, w, window_strides=(1, 1),
            padding=[(dil, dil), (dil, dil)], rhs_dilation=(dil, dil),
            dimension_numbers=("NCHW", "OIHW", "NCHW"),
            feature_group_count=raw["G"])
        y = y * s[None, :, None, None] + b[None, :, None, None]
        outs.append(jnp.maximum(y, 0.0))
    U = outs[0] + outs[1]
    s_pool = jnp.mean(U, axis=(2, 3))
    z = jnp.maximum(s_pool @ raw["wfc1_t"].T * raw["bnf_s"] + raw["bnf_b"], 0.0)
    logits = (z @ raw["wfc2_t"].T).reshape(B, M, C_out)
    att = jax.nn.softmax(logits, axis=1)
    a1 = att[:, 0, :][:, :, None, None]
    a2 = att[:, 1, :][:, :, None, None]
    return outs[0] * a1 + outs[1] * a2


if __name__ == "__main__":
    key = jax.random.PRNGKey(0)
    kx, kp, kx2, kp2 = jax.random.split(key, 4)

    # Config 1 (module's natural config): groups=32 == channels -> depthwise
    # VPU path, lane-dense (H, W*C) layout, NHWC-native entry point.
    B, C, H, W = 4, 32, 8, 8
    x = jax.random.normal(kx, (B, C, H, W), jnp.float32)
    raw = init_params(kp, C, C)
    x_nhwc = jnp.transpose(x, (0, 2, 3, 1))           # test-harness layout only
    out_nhwc = jax.block_until_ready(skconv_pallas_nhwc(x_nhwc, raw))
    ref_nhwc = jnp.transpose(skconv_ref(x, raw), (0, 2, 3, 1))
    assert out_nhwc.shape == (B, H, W, C)
    err = float(jnp.max(jnp.abs(out_nhwc - ref_nhwc)))
    assert jnp.allclose(out_nhwc, ref_nhwc, atol=1e-3, rtol=1e-3), \
        f"depthwise max abs err {err}"

    # NCHW compatibility shim parity with the PyTorch-layout reference.
    out_nchw = jax.block_until_ready(skconv_pallas(x, raw))
    assert jnp.allclose(out_nchw, skconv_ref(x, raw), atol=1e-3, rtol=1e-3)

    # Config 2: channels=64, groups=32 (group size 2) -> per-tap bf16 MXU
    # path (f32 accumulation); tolerance loosened for bf16 operand rounding.
    B2, C2 = 2, 64
    x2 = jax.random.normal(kx2, (B2, C2, H, W), jnp.float32)
    raw2 = init_params(kp2, C2, C2)
    x2_nhwc = jnp.transpose(x2, (0, 2, 3, 1))
    out2 = jax.block_until_ready(skconv_pallas_nhwc(x2_nhwc, raw2))
    ref2 = jnp.transpose(skconv_ref(x2, raw2), (0, 2, 3, 1))
    err2 = float(jnp.max(jnp.abs(out2 - ref2)))
    assert out2.shape == (B2, H, W, C2)
    assert jnp.allclose(out2, ref2, atol=2e-2, rtol=2e-2), f"grouped max abs err {err2}"

    print("KERNEL_OK")
</pallas_src>

<mosaic_0001>
module attributes {stable_mosaic.version = 11 : i64} {
  func.func @_skconv_dw_kernel(%arg0: i32, %arg1: memref<2x8x256xf32, #tpu.memory_space<vmem>>, %arg2: memref<3x3x256xf32, #tpu.memory_space<vmem>>, %arg3: memref<3x3x256xf32, #tpu.memory_space<vmem>>, %arg4: memref<1x256xf32, #tpu.memory_space<vmem>>, %arg5: memref<1x256xf32, #tpu.memory_space<vmem>>, %arg6: memref<32x32xf32, #tpu.memory_space<vmem>>, %arg7: memref<1x32xf32, #tpu.memory_space<vmem>>, %arg8: memref<32x64xf32, #tpu.memory_space<vmem>>, %arg9: memref<2x8x256xf32, #tpu.memory_space<vmem>>, %arg10: memref<2x12x384xf32, #tpu.memory_space<vmem>>) attributes {dimension_semantics = [#tpu.dimension_semantics<parallel>], iteration_bounds = array<i64: 2>, scalar_prefetch = 0 : i64, scratch_operands = 1 : i64, tpu.core_type = #tpu.core_type<tc>, window_params = [{transform_indices = @transform_0, window_bounds = array<i64: 2, 8, 256>}, {pipeline_mode = #tpu.pipeline_mode<synchronous>, transform_indices = @transform_1, window_bounds = array<i64: 3, 3, 256>}, {pipeline_mode = #tpu.pipeline_mode<synchronous>, transform_indices = @transform_2, window_bounds = array<i64: 3, 3, 256>}, {pipeline_mode = #tpu.pipeline_mode<synchronous>, transform_indices = @transform_3, window_bounds = array<i64: 1, 256>}, {pipeline_mode = #tpu.pipeline_mode<synchronous>, transform_indices = @transform_4, window_bounds = array<i64: 1, 256>}, {pipeline_mode = #tpu.pipeline_mode<synchronous>, transform_indices = @transform_5, window_bounds = array<i64: 32, 32>}, {pipeline_mode = #tpu.pipeline_mode<synchronous>, transform_indices = @transform_6, window_bounds = array<i64: 1, 32>}, {pipeline_mode = #tpu.pipeline_mode<synchronous>, transform_indices = @transform_7, window_bounds = array<i64: 32, 64>}, {transform_indices = @transform_8, window_bounds = array<i64: 2, 8, 256>}]} {
    %cst = arith.constant 0.000000e+00 : f32
    %0 = vector.broadcast %cst : f32 to vector<2x2x384xf32>
    %c0 = arith.constant 0 : index
    %c0_0 = arith.constant 0 : index
    %c0_1 = arith.constant 0 : index
    %1 = vector.load %arg10[%c0, %c0_0, %c0_1] : memref<2x12x384xf32, #tpu.memory_space<vmem>>, vector<2x2x384xf32>
    tpu.vector_store %arg10[%c0, %c0_0, %c0_1], %0 {strides = array<i32>} : memref<2x12x384xf32, #tpu.memory_space<vmem>>, vector<2x2x384xf32>,
    %c0_2 = arith.constant 0 : index
    %c10 = arith.constant 10 : index
    %c0_3 = arith.constant 0 : index
    %2 = vector.load %arg10[%c0_2, %c10, %c0_3] : memref<2x12x384xf32, #tpu.memory_space<vmem>>, vector<2x2x384xf32>
    tpu.vector_store %arg10[%c0_2, %c10, %c0_3], %0 {strides = array<i32>} : memref<2x12x384xf32, #tpu.memory_space<vmem>>, vector<2x2x384xf32>,
    %cst_4 = arith.constant 0.000000e+00 : f32
    %3 = vector.broadcast %cst_4 : f32 to vector<2x8x64xf32>
    %c0_5 = arith.constant 0 : index
    %c2 = arith.constant 2 : index
    %c0_6 = arith.constant 0 : index
    %4 = vector.load %arg10[%c0_5, %c2, %c0_6] : memref<2x12x384xf32, #tpu.memory_space<vmem>>, vector<2x8x64xf32>
    tpu.vector_store %arg10[%c0_5, %c2, %c0_6], %3 {strides = array<i32>} : memref<2x12x384xf32, #tpu.memory_space<vmem>>, vector<2x8x64xf32>,
    %c0_7 = arith.constant 0 : index
    %c2_8 = arith.constant 2 : index
    %c320 = arith.constant 320 : index
    %5 = vector.load %arg10[%c0_7, %c2_8, %c320] : memref<2x12x384xf32, #tpu.memory_space<vmem>>, vector<2x8x64xf32>
    tpu.vector_store %arg10[%c0_7, %c2_8, %c320], %3 {strides = array<i32>} : memref<2x12x384xf32, #tpu.memory_space<vmem>>, vector<2x8x64xf32>,
    %c0_9 = arith.constant 0 : index
    %c0_10 = arith.constant 0 : index
    %c0_11 = arith.constant 0 : index
    %6 = vector.load %arg1[%c0_9, %c0_10, %c0_11] : memref<2x8x256xf32, #tpu.memory_space<vmem>>, vector<2x8x256xf32>
    %c0_12 = arith.constant 0 : index
    %c2_13 = arith.constant 2 : index
    %c64 = arith.constant 64 : index
    %7 = vector.load %arg10[%c0_12, %c2_13, %c64] : memref<2x12x384xf32, #tpu.memory_space<vmem>>, vector<2x8x256xf32>
    tpu.vector_store %arg10[%c0_12, %c2_13, %c64], %6 {strides = array<i32>} : memref<2x12x384xf32, #tpu.memory_space<vmem>>, vector<2x8x256xf32>,
    %c0_14 = arith.constant 0 : index
    %c0_15 = arith.constant 0 : index
    %c0_16 = arith.constant 0 : index
    %8 = vector.load %arg2[%c0_14, %c0_15, %c0_16] : memref<3x3x256xf32, #tpu.memory_space<vmem>>, vector<3x3x256xf32>
    %c0_17 = arith.constant 0 : index
    %c1 = arith.constant 1 : index
    %c0_18 = arith.constant 0 : index
    %9 = vector.load %arg10[%c0_17, %c1, %c0_18] : memref<2x12x384xf32, #tpu.memory_space<vmem>>, vector<2x8x384xf32>
    %10 = vector.extract_strided_slice %9 {offsets = [0, 0, 32], sizes = [2, 8, 256], strides = [1, 1, 1]} : vector<2x8x384xf32> to vector<2x8x256xf32>
    %11 = vector.extract_strided_slice %8 {offsets = [0, 0, 0], sizes = [1, 1, 256], strides = [1, 1, 1]} : vector<3x3x256xf32> to vector<1x1x256xf32>
    %12 = vector.shape_cast %11 : vector<1x1x256xf32> to vector<256xf32>
    %13 = vector.shape_cast %12 : vector<256xf32> to vector<1x1x256xf32>
    %14 = vector.broadcast %13 : vector<1x1x256xf32> to vector<2x8x256xf32>
    %15 = arith.mulf %10, %14 : vector<2x8x256xf32>
    %16 = vector.extract_strided_slice %9 {offsets = [0, 0, 64], sizes = [2, 8, 256], strides = [1, 1, 1]} : vector<2x8x384xf32> to vector<2x8x256xf32>
    %17 = vector.extract_strided_slice %8 {offsets = [0, 1, 0], sizes = [1, 1, 256], strides = [1, 1, 1]} : vector<3x3x256xf32> to vector<1x1x256xf32>
    %18 = vector.shape_cast %17 : vector<1x1x256xf32> to vector<256xf32>
    %19 = vector.shape_cast %18 : vector<256xf32> to vector<1x1x256xf32>
    %20 = vector.broadcast %19 : vector<1x1x256xf32> to vector<2x8x256xf32>
    %21 = arith.mulf %16, %20 : vector<2x8x256xf32>
    %22 = arith.addf %15, %21 : vector<2x8x256xf32>
    %23 = vector.extract_strided_slice %9 {offsets = [0, 0, 96], sizes = [2, 8, 256], strides = [1, 1, 1]} : vector<2x8x384xf32> to vector<2x8x256xf32>
    %24 = vector.extract_strided_slice %8 {offsets = [0, 2, 0], sizes = [1, 1, 256], strides = [1, 1, 1]} : vector<3x3x256xf32> to vector<1x1x256xf32>
    %25 = vector.shape_cast %24 : vector<1x1x256xf32> to vector<256xf32>
    %26 = vector.shape_cast %25 : vector<256xf32> to vector<1x1x256xf32>
    %27 = vector.broadcast %26 : vector<1x1x256xf32> to vector<2x8x256xf32>
    %28 = arith.mulf %23, %27 : vector<2x8x256xf32>
    %29 = arith.addf %22, %28 : vector<2x8x256xf32>
    %c0_19 = arith.constant 0 : index
    %c2_20 = arith.constant 2 : index
    %c0_21 = arith.constant 0 : index
    %30 = vector.load %arg10[%c0_19, %c2_20, %c0_21] : memref<2x12x384xf32, #tpu.memory_space<vmem>>, vector<2x8x384xf32>
    %31 = vector.extract_strided_slice %30 {offsets = [0, 0, 32], sizes = [2, 8, 256], strides = [1, 1, 1]} : vector<2x8x384xf32> to vector<2x8x256xf32>
    %32 = vector.extract_strided_slice %8 {offsets = [1, 0, 0], sizes = [1, 1, 256], strides = [1, 1, 1]} : vector<3x3x256xf32> to vector<1x1x256xf32>
    %33 = vector.shape_cast %32 : vector<1x1x256xf32> to vector<256xf32>
    %34 = vector.shape_cast %33 : vector<256xf32> to vector<1x1x256xf32>
    %35 = vector.broadcast %34 : vector<1x1x256xf32> to vector<2x8x256xf32>
    %36 = arith.mulf %31, %35 : vector<2x8x256xf32>
    %37 = arith.addf %29, %36 : vector<2x8x256xf32>
    %38 = vector.extract_strided_slice %30 {offsets = [0, 0, 64], sizes = [2, 8, 256], strides = [1, 1, 1]} : vector<2x8x384xf32> to vector<2x8x256xf32>
    %39 = vector.extract_strided_slice %8 {offsets = [1, 1, 0], sizes = [1, 1, 256], strides = [1, 1, 1]} : vector<3x3x256xf32> to vector<1x1x256xf32>
    %40 = vector.shape_cast %39 : vector<1x1x256xf32> to vector<256xf32>
    %41 = vector.shape_cast %40 : vector<256xf32> to vector<1x1x256xf32>
    %42 = vector.broadcast %41 : vector<1x1x256xf32> to vector<2x8x256xf32>
    %43 = arith.mulf %38, %42 : vector<2x8x256xf32>
    %44 = arith.addf %37, %43 : vector<2x8x256xf32>
    %45 = vector.extract_strided_slice %30 {offsets = [0, 0, 96], sizes = [2, 8, 256], strides = [1, 1, 1]} : vector<2x8x384xf32> to vector<2x8x256xf32>
    %46 = vector.extract_strided_slice %8 {offsets = [1, 2, 0], sizes = [1, 1, 256], strides = [1, 1, 1]} : vector<3x3x256xf32> to vector<1x1x256xf32>
    %47 = vector.shape_cast %46 : vector<1x1x256xf32> to vector<256xf32>
    %48 = vector.shape_cast %47 : vector<256xf32> to vector<1x1x256xf32>
    %49 = vector.broadcast %48 : vector<1x1x256xf32> to vector<2x8x256xf32>
    %50 = arith.mulf %45, %49 : vector<2x8x256xf32>
    %51 = arith.addf %44, %50 : vector<2x8x256xf32>
    %c0_22 = arith.constant 0 : index
    %c3 = arith.constant 3 : index
    %c0_23 = arith.constant 0 : index
    %52 = vector.load %arg10[%c0_22, %c3, %c0_23] : memref<2x12x384xf32, #tpu.memory_space<vmem>>, vector<2x8x384xf32>
    %53 = vector.extract_strided_slice %52 {offsets = [0, 0, 32], sizes = [2, 8, 256], strides = [1, 1, 1]} : vector<2x8x384xf32> to vector<2x8x256xf32>
    %54 = vector.extract_strided_slice %8 {offsets = [2, 0, 0], sizes = [1, 1, 256], strides = [1, 1, 1]} : vector<3x3x256xf32> to vector<1x1x256xf32>
    %55 = vector.shape_cast %54 : vector<1x1x256xf32> to vector<256xf32>
    %56 = vector.shape_cast %55 : vector<256xf32> to vector<1x1x256xf32>
    %57 = vector.broadcast %56 : vector<1x1x256xf32> to vector<2x8x256xf32>
    %58 = arith.mulf %53, %57 : vector<2x8x256xf32>
    %59 = arith.addf %51, %58 : vector<2x8x256xf32>
    %60 = vector.extract_strided_slice %52 {offsets = [0, 0, 64], sizes = [2, 8, 256], strides = [1, 1, 1]} : vector<2x8x384xf32> to vector<2x8x256xf32>
    %61 = vector.extract_strided_slice %8 {offsets = [2, 1, 0], sizes = [1, 1, 256], strides = [1, 1, 1]} : vector<3x3x256xf32> to vector<1x1x256xf32>
    %62 = vector.shape_cast %61 : vector<1x1x256xf32> to vector<256xf32>
    %63 = vector.shape_cast %62 : vector<256xf32> to vector<1x1x256xf32>
    %64 = vector.broadcast %63 : vector<1x1x256xf32> to vector<2x8x256xf32>
    %65 = arith.mulf %60, %64 : vector<2x8x256xf32>
    %66 = arith.addf %59, %65 : vector<2x8x256xf32>
    %67 = vector.extract_strided_slice %52 {offsets = [0, 0, 96], sizes = [2, 8, 256], strides = [1, 1, 1]} : vector<2x8x384xf32> to vector<2x8x256xf32>
    %68 = vector.extract_strided_slice %8 {offsets = [2, 2, 0], sizes = [1, 1, 256], strides = [1, 1, 1]} : vector<3x3x256xf32> to vector<1x1x256xf32>
    %69 = vector.shape_cast %68 : vector<1x1x256xf32> to vector<256xf32>
    %70 = vector.shape_cast %69 : vector<256xf32> to vector<1x1x256xf32>
    %71 = vector.broadcast %70 : vector<1x1x256xf32> to vector<2x8x256xf32>
    %72 = arith.mulf %67, %71 : vector<2x8x256xf32>
    %73 = arith.addf %66, %72 : vector<2x8x256xf32>
    %c0_24 = arith.constant 0 : index
    %c0_25 = arith.constant 0 : index
    %74 = vector.load %arg4[%c0_24, %c0_25] : memref<1x256xf32, #tpu.memory_space<vmem>>, vector<1x256xf32>
    %75 = vector.shape_cast %74 : vector<1x256xf32> to vector<1x1x256xf32>
    %76 = vector.broadcast %75 : vector<1x1x256xf32> to vector<2x8x256xf32>
    %77 = arith.addf %73, %76 : vector<2x8x256xf32>
    %cst_26 = arith.constant 0.000000e+00 : f32
    %78 = vector.broadcast %cst_26 : f32 to vector<2x8x256xf32>
    %79 = arith.maximumf %77, %78 : vector<2x8x256xf32>
    %c0_27 = arith.constant 0 : index
    %c0_28 = arith.constant 0 : index
    %c0_29 = arith.constant 0 : index
    %80 = vector.load %arg3[%c0_27, %c0_28, %c0_29] : memref<3x3x256xf32, #tpu.memory_space<vmem>>, vector<3x3x256xf32>
    %c0_30 = arith.constant 0 : index
    %c0_31 = arith.constant 0 : index
    %c0_32 = arith.constant 0 : index
    %81 = vector.load %arg10[%c0_30, %c0_31, %c0_32] : memref<2x12x384xf32, #tpu.memory_space<vmem>>, vector<2x8x384xf32>
    %82 = vector.extract_strided_slice %81 {offsets = [0, 0, 0], sizes = [2, 8, 256], strides = [1, 1, 1]} : vector<2x8x384xf32> to vector<2x8x256xf32>
    %83 = vector.extract_strided_slice %80 {offsets = [0, 0, 0], sizes = [1, 1, 256], strides = [1, 1, 1]} : vector<3x3x256xf32> to vector<1x1x256xf32>
    %84 = vector.shape_cast %83 : vector<1x1x256xf32> to vector<256xf32>
    %85 = vector.shape_cast %84 : vector<256xf32> to vector<1x1x256xf32>
    %86 = vector.broadcast %85 : vector<1x1x256xf32> to vector<2x8x256xf32>
    %87 = arith.mulf %82, %86 : vector<2x8x256xf32>
    %88 = vector.extract_strided_slice %81 {offsets = [0, 0, 64], sizes = [2, 8, 256], strides = [1, 1, 1]} : vector<2x8x384xf32> to vector<2x8x256xf32>
    %89 = vector.extract_strided_slice %80 {offsets = [0, 1, 0], sizes = [1, 1, 256], strides = [1, 1, 1]} : vector<3x3x256xf32> to vector<1x1x256xf32>
    %90 = vector.shape_cast %89 : vector<1x1x256xf32> to vector<256xf32>
    %91 = vector.shape_cast %90 : vector<256xf32> to vector<1x1x256xf32>
    %92 = vector.broadcast %91 : vector<1x1x256xf32> to vector<2x8x256xf32>
    %93 = arith.mulf %88, %92 : vector<2x8x256xf32>
    %94 = arith.addf %87, %93 : vector<2x8x256xf32>
    %95 = vector.extract_strided_slice %81 {offsets = [0, 0, 128], sizes = [2, 8, 256], strides = [1, 1, 1]} : vector<2x8x384xf32> to vector<2x8x256xf32>
    %96 = vector.extract_strided_slice %80 {offsets = [0, 2, 0], sizes = [1, 1, 256], strides = [1, 1, 1]} : vector<3x3x256xf32> to vector<1x1x256xf32>
    %97 = vector.shape_cast %96 : vector<1x1x256xf32> to vector<256xf32>
    %98 = vector.shape_cast %97 : vector<256xf32> to vector<1x1x256xf32>
    %99 = vector.broadcast %98 : vector<1x1x256xf32> to vector<2x8x256xf32>
    %100 = arith.mulf %95, %99 : vector<2x8x256xf32>
    %101 = arith.addf %94, %100 : vector<2x8x256xf32>
    %c0_33 = arith.constant 0 : index
    %c2_34 = arith.constant 2 : index
    %c0_35 = arith.constant 0 : index
    %102 = vector.load %arg10[%c0_33, %c2_34, %c0_35] : memref<2x12x384xf32, #tpu.memory_space<vmem>>, vector<2x8x384xf32>
    %103 = vector.extract_strided_slice %102 {offsets = [0, 0, 0], sizes = [2, 8, 256], strides = [1, 1, 1]} : vector<2x8x384xf32> to vector<2x8x256xf32>
    %104 = vector.extract_strided_slice %80 {offsets = [1, 0, 0], sizes = [1, 1, 256], strides = [1, 1, 1]} : vector<3x3x256xf32> to vector<1x1x256xf32>
    %105 = vector.shape_cast %104 : vector<1x1x256xf32> to vector<256xf32>
    %106 = vector.shape_cast %105 : vector<256xf32> to vector<1x1x256xf32>
    %107 = vector.broadcast %106 : vector<1x1x256xf32> to vector<2x8x256xf32>
    %108 = arith.mulf %103, %107 : vector<2x8x256xf32>
    %109 = arith.addf %101, %108 : vector<2x8x256xf32>
    %110 = vector.extract_strided_slice %102 {offsets = [0, 0, 64], sizes = [2, 8, 256], strides = [1, 1, 1]} : vector<2x8x384xf32> to vector<2x8x256xf32>
    %111 = vector.extract_strided_slice %80 {offsets = [1, 1, 0], sizes = [1, 1, 256], strides = [1, 1, 1]} : vector<3x3x256xf32> to vector<1x1x256xf32>
    %112 = vector.shape_cast %111 : vector<1x1x256xf32> to vector<256xf32>
    %113 = vector.shape_cast %112 : vector<256xf32> to vector<1x1x256xf32>
    %114 = vector.broadcast %113 : vector<1x1x256xf32> to vector<2x8x256xf32>
    %115 = arith.mulf %110, %114 : vector<2x8x256xf32>
    %116 = arith.addf %109, %115 : vector<2x8x256xf32>
    %117 = vector.extract_strided_slice %102 {offsets = [0, 0, 128], sizes = [2, 8, 256], strides = [1, 1, 1]} : vector<2x8x384xf32> to vector<2x8x256xf32>
    %118 = vector.extract_strided_slice %80 {offsets = [1, 2, 0], sizes = [1, 1, 256], strides = [1, 1, 1]} : vector<3x3x256xf32> to vector<1x1x256xf32>
    %119 = vector.shape_cast %118 : vector<1x1x256xf32> to vector<256xf32>
    %120 = vector.shape_cast %119 : vector<256xf32> to vector<1x1x256xf32>
    %121 = vector.broadcast %120 : vector<1x1x256xf32> to vector<2x8x256xf32>
    %122 = arith.mulf %117, %121 : vector<2x8x256xf32>
    %123 = arith.addf %116, %122 : vector<2x8x256xf32>
    %c0_36 = arith.constant 0 : index
    %c4 = arith.constant 4 : index
    %c0_37 = arith.constant 0 : index
    %124 = vector.load %arg10[%c0_36, %c4, %c0_37] : memref<2x12x384xf32, #tpu.memory_space<vmem>>, vector<2x8x384xf32>
    %125 = vector.extract_strided_slice %124 {offsets = [0, 0, 0], sizes = [2, 8, 256], strides = [1, 1, 1]} : vector<2x8x384xf32> to vector<2x8x256xf32>
    %126 = vector.extract_strided_slice %80 {offsets = [2, 0, 0], sizes = [1, 1, 256], strides = [1, 1, 1]} : vector<3x3x256xf32> to vector<1x1x256xf32>
    %127 = vector.shape_cast %126 : vector<1x1x256xf32> to vector<256xf32>
    %128 = vector.shape_cast %127 : vector<256xf32> to vector<1x1x256xf32>
    %129 = vector.broadcast %128 : vector<1x1x256xf32> to vector<2x8x256xf32>
    %130 = arith.mulf %125, %129 : vector<2x8x256xf32>
    %131 = arith.addf %123, %130 : vector<2x8x256xf32>
    %132 = vector.extract_strided_slice %124 {offsets = [0, 0, 64], sizes = [2, 8, 256], strides = [1, 1, 1]} : vector<2x8x384xf32> to vector<2x8x256xf32>
    %133 = vector.extract_strided_slice %80 {offsets = [2, 1, 0], sizes = [1, 1, 256], strides = [1, 1, 1]} : vector<3x3x256xf32> to vector<1x1x256xf32>
    %134 = vector.shape_cast %133 : vector<1x1x256xf32> to vector<256xf32>
    %135 = vector.shape_cast %134 : vector<256xf32> to vector<1x1x256xf32>
    %136 = vector.broadcast %135 : vector<1x1x256xf32> to vector<2x8x256xf32>
    %137 = arith.mulf %132, %136 : vector<2x8x256xf32>
    %138 = arith.addf %131, %137 : vector<2x8x256xf32>
    %139 = vector.extract_strided_slice %124 {offsets = [0, 0, 128], sizes = [2, 8, 256], strides = [1, 1, 1]} : vector<2x8x384xf32> to vector<2x8x256xf32>
    %140 = vector.extract_strided_slice %80 {offsets = [2, 2, 0], sizes = [1, 1, 256], strides = [1, 1, 1]} : vector<3x3x256xf32> to vector<1x1x256xf32>
    %141 = vector.shape_cast %140 : vector<1x1x256xf32> to vector<256xf32>
    %142 = vector.shape_cast %141 : vector<256xf32> to vector<1x1x256xf32>
    %143 = vector.broadcast %142 : vector<1x1x256xf32> to vector<2x8x256xf32>
    %144 = arith.mulf %139, %143 : vector<2x8x256xf32>
    %145 = arith.addf %138, %144 : vector<2x8x256xf32>
    %c0_38 = arith.constant 0 : index
    %c0_39 = arith.constant 0 : index
    %146 = vector.load %arg5[%c0_38, %c0_39] : memref<1x256xf32, #tpu.memory_space<vmem>>, vector<1x256xf32>
    %147 = vector.shape_cast %146 : vector<1x256xf32> to vector<1x1x256xf32>
    %148 = vector.broadcast %147 : vector<1x1x256xf32> to vector<2x8x256xf32>
    %149 = arith.addf %145, %148 : vector<2x8x256xf32>
    %cst_40 = arith.constant 0.000000e+00 : f32
    %150 = vector.broadcast %cst_40 : f32 to vector<2x8x256xf32>
    %151 = arith.maximumf %149, %150 : vector<2x8x256xf32>
    %152 = arith.addf %79, %151 : vector<2x8x256xf32>
    %cst_41 = arith.constant dense<0.000000e+00> : vector<2x256xf32>
    %153 = vector.multi_reduction <add>, %152, %cst_41 [1] : vector<2x8x256xf32> to vector<2x256xf32>
    %154 = vector.extract_strided_slice %153 {offsets = [0, 0], sizes = [2, 32], strides = [1, 1]} : vector<2x256xf32> to vector<2x32xf32>
    %155 = vector.extract_strided_slice %153 {offsets = [0, 32], sizes = [2, 32], strides = [1, 1]} : vector<2x256xf32> to vector<2x32xf32>
    %156 = arith.addf %154, %155 : vector<2x32xf32>
    %157 = vector.extract_strided_slice %153 {offsets = [0, 64], sizes = [2, 32], strides = [1, 1]} : vector<2x256xf32> to vector<2x32xf32>
    %158 = arith.addf %156, %157 : vector<2x32xf32>
    %159 = vector.extract_strided_slice %153 {offsets = [0, 96], sizes = [2, 32], strides = [1, 1]} : vector<2x256xf32> to vector<2x32xf32>
    %160 = arith.addf %158, %159 : vector<2x32xf32>
    %161 = vector.extract_strided_slice %153 {offsets = [0, 128], sizes = [2, 32], strides = [1, 1]} : vector<2x256xf32> to vector<2x32xf32>
    %162 = arith.addf %160, %161 : vector<2x32xf32>
    %163 = vector.extract_strided_slice %153 {offsets = [0, 160], sizes = [2, 32], strides = [1, 1]} : vector<2x256xf32> to vector<2x32xf32>
    %164 = arith.addf %162, %163 : vector<2x32xf32>
    %165 = vector.extract_strided_slice %153 {offsets = [0, 192], sizes = [2, 32], strides = [1, 1]} : vector<2x256xf32> to vector<2x32xf32>
    %166 = arith.addf %164, %165 : vector<2x32xf32>
    %167 = vector.extract_strided_slice %153 {offsets = [0, 224], sizes = [2, 32], strides = [1, 1]} : vector<2x256xf32> to vector<2x32xf32>
    %168 = arith.addf %166, %167 : vector<2x32xf32>
    %cst_42 = arith.constant 1.562500e-02 : f32
    %169 = vector.broadcast %cst_42 : f32 to vector<2x32xf32>
    %170 = arith.mulf %168, %169 : vector<2x32xf32>
    %c0_43 = arith.constant 0 : index
    %c0_44 = arith.constant 0 : index
    %171 = vector.load %arg6[%c0_43, %c0_44] : memref<32x32xf32, #tpu.memory_space<vmem>>, vector<32x32xf32>
    %cst_45 = arith.constant dense<0.000000e+00> : vector<2x32xf32>
    %172 = tpu.matmul %170, %171, %cst_45 {dimension_numbers = #tpu.dot_dimension_numbers<[1], [0], [0], [1], [0, 0, 1, 1], [], []>} : vector<2x32xf32>, vector<32x32xf32>, vector<2x32xf32> -> vector<2x32xf32>
    %c0_46 = arith.constant 0 : index
    %c0_47 = arith.constant 0 : index
    %173 = vector.load %arg7[%c0_46, %c0_47] : memref<1x32xf32, #tpu.memory_space<vmem>>, vector<1x32xf32>
    %174 = vector.broadcast %173 : vector<1x32xf32> to vector<2x32xf32>
    %175 = arith.addf %172, %174 : vector<2x32xf32>
    %cst_48 = arith.constant 0.000000e+00 : f32
    %176 = vector.broadcast %cst_48 : f32 to vector<2x32xf32>
    %177 = arith.maximumf %175, %176 : vector<2x32xf32>
    %c0_49 = arith.constant 0 : index
    %c0_50 = arith.constant 0 : index
    %178 = vector.load %arg8[%c0_49, %c0_50] : memref<32x64xf32, #tpu.memory_space<vmem>>, vector<32x64xf32>
    %cst_51 = arith.constant dense<0.000000e+00> : vector<2x64xf32>
    %179 = tpu.matmul %177, %178, %cst_51 {dimension_numbers = #tpu.dot_dimension_numbers<[1], [0], [0], [1], [0, 0, 1, 1], [], []>} : vector<2x32xf32>, vector<32x64xf32>, vector<2x64xf32> -> vector<2x64xf32>
    %180 = vector.extract_strided_slice %179 {offsets = [0, 32], sizes = [2, 32], strides = [1, 1]} : vector<2x64xf32> to vector<2x32xf32>
    %181 = vector.extract_strided_slice %179 {offsets = [0, 0], sizes = [2, 32], strides = [1, 1]} : vector<2x64xf32> to vector<2x32xf32>
    %182 = arith.subf %180, %181 : vector<2x32xf32>
    %183 = math.exp %182 : vector<2x32xf32>
    %cst_52 = arith.constant 1.000000e+00 : f32
    %184 = vector.broadcast %cst_52 : f32 to vector<2x32xf32>
    %185 = arith.addf %184, %183 : vector<2x32xf32>
    %cst_53 = arith.constant 1.000000e+00 : f32
    %186 = vector.broadcast %cst_53 : f32 to vector<2x32xf32>
    %187 = arith.divf %186, %185 : vector<2x32xf32>
    %188 = tpu.concatenate %187, %187, %187, %187, %187, %187, %187, %187 in 1 : vector<2x32xf32>, vector<2x32xf32>, vector<2x32xf32>, vector<2x32xf32>, vector<2x32xf32>, vector<2x32xf32>, vector<2x32xf32>, vector<2x32xf32> -> vector<2x256xf32>
    %189 = vector.shape_cast %188 : vector<2x256xf32> to vector<2x1x256xf32>
    %190 = arith.subf %79, %151 : vector<2x8x256xf32>
    %191 = vector.broadcast %189 : vector<2x1x256xf32> to vector<2x8x256xf32>
    %192 = arith.mulf %191, %190 : vector<2x8x256xf32>
    %193 = arith.addf %151, %192 : vector<2x8x256xf32>
    %c0_54 = arith.constant 0 : index
    %c0_55 = arith.constant 0 : index
    %c0_56 = arith.constant 0 : index
    %194 = vector.load %arg9[%c0_54, %c0_55, %c0_56] : memref<2x8x256xf32, #tpu.memory_space<vmem>>, vector<2x8x256xf32>
    tpu.vector_store %arg9[%c0_54, %c0_55, %c0_56], %193 {strides = array<i32>} : memref<2x8x256xf32, #tpu.memory_space<vmem>>, vector<2x8x256xf32>,
    return
  }
  func.func @transform_0(%arg0: i32) -> (i32, i32, i32) {
    %c0_i32 = arith.constant 0 : i32
    %c0_i32_0 = arith.constant 0 : i32
    %c0_i32_1 = arith.constant 0 : i32
    return %arg0, %c0_i32, %c0_i32_0 : i32, i32, i32
  }
  func.func @transform_1(%arg0: i32) -> (i32, i32, i32) {
    %c0_i32 = arith.constant 0 : i32
    %c0_i32_0 = arith.constant 0 : i32
    %c0_i32_1 = arith.constant 0 : i32
    %c0_i32_2 = arith.constant 0 : i32
    return %c0_i32, %c0_i32_0, %c0_i32_1 : i32, i32, i32
  }
  func.func @transform_2(%arg0: i32) -> (i32, i32, i32) {
    %c0_i32 = arith.constant 0 : i32
    %c0_i32_0 = arith.constant 0 : i32
    %c0_i32_1 = arith.constant 0 : i32
    %c0_i32_2 = arith.constant 0 : i32
    return %c0_i32, %c0_i32_0, %c0_i32_1 : i32, i32, i32
  }
  func.func @transform_3(%arg0: i32) -> (i32, i32) {
    %c0_i32 = arith.constant 0 : i32
    %c0_i32_0 = arith.constant 0 : i32
    %c0_i32_1 = arith.constant 0 : i32
    return %c0_i32, %c0_i32_0 : i32, i32
  }
  func.func @transform_4(%arg0: i32) -> (i32, i32) {
    %c0_i32 = arith.constant 0 : i32
    %c0_i32_0 = arith.constant 0 : i32
    %c0_i32_1 = arith.constant 0 : i32
    return %c0_i32, %c0_i32_0 : i32, i32
  }
  func.func @transform_5(%arg0: i32) -> (i32, i32) {
    %c0_i32 = arith.constant 0 : i32
    %c0_i32_0 = arith.constant 0 : i32
    %c0_i32_1 = arith.constant 0 : i32
    return %c0_i32, %c0_i32_0 : i32, i32
  }
  func.func @transform_6(%arg0: i32) -> (i32, i32) {
    %c0_i32 = arith.constant 0 : i32
    %c0_i32_0 = arith.constant 0 : i32
    %c0_i32_1 = arith.constant 0 : i32
    return %c0_i32, %c0_i32_0 : i32, i32
  }
  func.func @transform_7(%arg0: i32) -> (i32, i32) {
    %c0_i32 = arith.constant 0 : i32
    %c0_i32_0 = arith.constant 0 : i32
    %c0_i32_1 = arith.constant 0 : i32
    return %c0_i32, %c0_i32_0 : i32, i32
  }
  func.func @transform_8(%arg0: i32) -> (i32, i32, i32) {
    %c0_i32 = arith.constant 0 : i32
    %c0_i32_0 = arith.constant 0 : i32
    %c0_i32_1 = arith.constant 0 : i32
    return %arg0, %c0_i32, %c0_i32_0 : i32, i32, i32
  }
}

</mosaic_0001>

<llo_original>
// kernel: tpu_custom_call.1
$region0: #{tpu_custom_call.1}
  #allocation0 [shape = 'u32[]', space=smem, size = 0x4, offset = 0x4, fixed_abs, tag = 'smem constant byte address 0x4 - core index']
  #allocation1 [shape = 'u32[72,128]{1,0:T(1,128)}', space=vmem, size = 0x9000, scoped, tag = 'internal scratch']
  #allocation2 [shape = 'f32[2,12,384]{2,1,0:T(8,128)}', space=vmem, size = 0xc000, scoped, tag = 'scratch operand']
  %s0 = inlined_call_operand.hbm [shape: f32[4,8,256], index: 0, kind: input, shape index: {}]
  %s1 = inlined_call_operand.hbm [shape: f32[3,3,256], index: 1, kind: input, shape index: {}]
  %s2 = inlined_call_operand.hbm [shape: f32[3,3,256], index: 2, kind: input, shape index: {}]
  %s3 = inlined_call_operand.vmem [shape: f32[1,256], index: 3, kind: input, shape index: {}]
  %s4 = inlined_call_operand.hbm [shape: f32[1,256], index: 4, kind: input, shape index: {}]
  %s5 = inlined_call_operand.hbm [shape: f32[32,32], index: 5, kind: input, shape index: {}]
  %s6 = inlined_call_operand.vmem [shape: f32[1,32], index: 6, kind: input, shape index: {}]
  %s7 = inlined_call_operand.hbm [shape: f32[32,64], index: 7, kind: input, shape index: {}]
  %s8 = inlined_call_operand.hbm [shape: f32[4,8,256], index: 8, kind: output, shape index: {}]
  %s9 = sld [smem:[#allocation0]]
  $region89: #{tpu_custom_call.1} parent=0
    _
  %s11 = ssub.s32 1, %s9
  %s12 = scalar_select 0, %s11, %s9
  $region1: #{tpu_custom_call.1} parent=0
    #allocation3 [shape = 'u8[32768]{0}', space=vmem, size = 0x8000, scoped, tag = 'input window, operand 0']
    #allocation4 [shape = 's32[2]{0}', space=sflag, size = 0x8, scoped, tag = 'scoped memory for tpu_custom_call.1']
    #allocation5 [shape = 's32[2]{0}', space=sflag, size = 0x8, scoped, tag = 'scoped memory for tpu_custom_call.1']
    #allocation6 [shape = 'u8[12288]{0}', space=vmem, size = 0x3000, scoped, tag = 'input window, operand 1, single buffered']
    #allocation7 [shape = 's32[1]{0}', space=sflag, size = 0x4, scoped, tag = 'scoped memory for tpu_custom_call.1']
    #allocation8 [shape = 'u8[12288]{0}', space=vmem, size = 0x3000, scoped, tag = 'input window, operand 2, single buffered']
    #allocation9 [shape = 'u8[1024]{0}', space=vmem, size = 0x400, scoped, tag = 'input window, operand 4, single buffered']
    #allocation10 [shape = 's32[1]{0}', space=sflag, size = 0x4, scoped, tag = 'scoped memory for tpu_custom_call.1']
    #allocation11 [shape = 'u8[16384]{0}', space=vmem, size = 0x4000, scoped, tag = 'input window, operand 5, single buffered']
    #allocation12 [shape = 'u8[16384]{0}', space=vmem, size = 0x4000, scoped, tag = 'input window, operand 7, single buffered']
    #allocation13 [shape = 's32[1]{0}', space=sflag, size = 0x4, scoped, tag = 'scoped memory for tpu_custom_call.1']
    #allocation14 [shape = 'u8[32768]{0}', space=vmem, size = 0x8000, scoped, tag = 'output window, operand 0']
    %13 = vsyncpa [#allocation4], 0
    %s14 = scalar_lea.sflag [#allocation4], 1
    %15 = vsyncpa %s14, 0
    %16 = vsyncpa [#allocation7], 0
    %17 = vsyncpa [#allocation10], 0
    %18 = vsyncpa [#allocation13], 0
    %19 = vsyncpa [#allocation5], 0
    %s20 = scalar_lea.sflag [#allocation5], 1
    %21 = vsyncpa %s20, 0
    loop: start=0, step=1, limit=4
    $region2: #{tpu_custom_call.1} parent=1 // loop_pre_header
      _
    $region3: #{tpu_custom_call.1} parent=1 // loop_header
      %s23 = sphi 0, %s27
      %p24 = scmp.ge.s32.totalorder %s23, 4
      %s33 = sphi 0, %s35
      %s36 = sphi 0, %s33
      %s37 = sphi 0, %s36
      %s53 = sphi 0, %s37
      %s57 = sphi 0, %s57
      %s59 = sphi 0, %s57
      %s60 = sphi 0, %s59
      %s74 = sphi 0, %s60
      %s78 = sphi 0, %s78
      %s80 = sphi 0, %s78
      %s81 = sphi 0, %s80
      %s95 = sphi 0, %s81
      %s99 = sphi 0, %s99
      %s101 = sphi 0, %s99
      %s102 = sphi 0, %s101
      %s116 = sphi 0, %s102
      %s120 = sphi 0, %s120
      %s122 = sphi 0, %s120
      %s123 = sphi 0, %s122
      %s137 = sphi 0, %s123
      %s141 = sphi 0, %s141
      %s143 = sphi 0, %s141
      %s144 = sphi 0, %s143
      %s158 = sphi 0, %s144
      %s162 = sphi 0, %s162
      %s164 = sphi 0, %s162
      %s165 = sphi 0, %s164
      %s179 = sphi 0, %s165
      %s183 = sphi 0, %s183
      %s185 = sphi 0, %s183
      %s186 = sphi 0, %s185
      %s200 = sphi 0, %s186
      %s206 = sphi 0, %s208
      %s209 = sphi 0, %s206
      %s210 = sphi 0, %s209
      %s226 = sphi 0, %s210
    $region4: #{tpu_custom_call.1} parent=1 // loop_header_branch
      %26 = sbr.rel (%p24) target = $region8
    $region5: #{tpu_custom_call.1} parent=1 // loop_body
      %s28 = ssub.s32 %s23, 1
      %s29 = ssub.s32 %s23, 2
      %s30 = sadd.s32 %s23, 1
      %s31 = ssub.s32 %s23, %s30
      %p32 = scmp.eq.s32.totalorder %s31, 0
      %s34 = sadd.s32 %s33, 1
      %s35 = scalar_select %p32, %s33, %s34
      %p38 = pneg %p32
      %p39 = scmp.eq.s32.totalorder %s23, 1
      %p40 = por %p38, %p39
      %p41 = scmp.ne.s32.totalorder %s33, %s36
      %p42 = scmp.eq.s32.totalorder %s23, 0
      %p43 = por %p41, %p42
      %p44 = scmp.ne.s32.totalorder %s33, %s36
      %p45 = scmp.eq.s32.totalorder %s28, 1
      %p46 = por %p44, %p45
      %p47 = scmp.ne.s32.totalorder %s36, %s37
      %p48 = scmp.eq.s32.totalorder %s28, 0
      %p49 = por %p47, %p48
      %p50 = scmp.ne.s32.totalorder %s36, %s37
      %p51 = scmp.eq.s32.totalorder %s29, 1
      %p52 = por %p50, %p51
      %p54 = scmp.ne.s32.totalorder %s37, %s53
      %p55 = scmp.eq.s32.totalorder %s29, 0
      %p56 = por %p54, %p55
      %s58 = sadd.s32 %s57, 1
      %p61 = scmp.eq.s32.totalorder %s23, 1
      %p62 = scmp.ne.s32.totalorder %s57, %s59
      %p63 = scmp.eq.s32.totalorder %s23, 0
      %p64 = por %p62, %p63
      %p65 = scmp.ne.s32.totalorder %s57, %s59
      %p66 = scmp.eq.s32.totalorder %s28, 1
      %p67 = por %p65, %p66
      %p68 = scmp.ne.s32.totalorder %s59, %s60
      %p69 = scmp.eq.s32.totalorder %s28, 0
      %p70 = por %p68, %p69
      %p71 = scmp.ne.s32.totalorder %s59, %s60
      %p72 = scmp.eq.s32.totalorder %s29, 1
      %p73 = por %p71, %p72
      %p75 = scmp.ne.s32.totalorder %s60, %s74
      %p76 = scmp.eq.s32.totalorder %s29, 0
      %p77 = por %p75, %p76
      %s79 = sadd.s32 %s78, 1
      %p82 = scmp.eq.s32.totalorder %s23, 1
      %p83 = scmp.ne.s32.totalorder %s78, %s80
      %p84 = scmp.eq.s32.totalorder %s23, 0
      %p85 = por %p83, %p84
      %p86 = scmp.ne.s32.totalorder %s78, %s80
      %p87 = scmp.eq.s32.totalorder %s28, 1
      %p88 = por %p86, %p87
      %p89 = scmp.ne.s32.totalorder %s80, %s81
      %p90 = scmp.eq.s32.totalorder %s28, 0
      %p91 = por %p89, %p90
      %p92 = scmp.ne.s32.totalorder %s80, %s81
      %p93 = scmp.eq.s32.totalorder %s29, 1
      %p94 = por %p92, %p93
      %p96 = scmp.ne.s32.totalorder %s81, %s95
      %p97 = scmp.eq.s32.totalorder %s29, 0
      %p98 = por %p96, %p97
      %s100 = sadd.s32 %s99, 1
      %p103 = scmp.eq.s32.totalorder %s23, 1
      %p104 = scmp.ne.s32.totalorder %s99, %s101
      %p105 = scmp.eq.s32.totalorder %s23, 0
      %p106 = por %p104, %p105
      %p107 = scmp.ne.s32.totalorder %s99, %s101
      %p108 = scmp.eq.s32.totalorder %s28, 1
      %p109 = por %p107, %p108
      %p110 = scmp.ne.s32.totalorder %s101, %s102
      %p111 = scmp.eq.s32.totalorder %s28, 0
      %p112 = por %p110, %p111
      %p113 = scmp.ne.s32.totalorder %s101, %s102
      %p114 = scmp.eq.s32.totalorder %s29, 1
      %p115 = por %p113, %p114
      %p117 = scmp.ne.s32.totalorder %s102, %s116
      %p118 = scmp.eq.s32.totalorder %s29, 0
      %p119 = por %p117, %p118
      %s121 = sadd.s32 %s120, 1
      %p124 = scmp.eq.s32.totalorder %s23, 1
      %p125 = scmp.ne.s32.totalorder %s120, %s122
      %p126 = scmp.eq.s32.totalorder %s23, 0
      %p127 = por %p125, %p126
      %p128 = scmp.ne.s32.totalorder %s120, %s122
      %p129 = scmp.eq.s32.totalorder %s28, 1
      %p130 = por %p128, %p129
      %p131 = scmp.ne.s32.totalorder %s122, %s123
      %p132 = scmp.eq.s32.totalorder %s28, 0
      %p133 = por %p131, %p132
      %p134 = scmp.ne.s32.totalorder %s122, %s123
      %p135 = scmp.eq.s32.totalorder %s29, 1
      %p136 = por %p134, %p135
      %p138 = scmp.ne.s32.totalorder %s123, %s137
      %p139 = scmp.eq.s32.totalorder %s29, 0
      %p140 = por %p138, %p139
      %s142 = sadd.s32 %s141, 1
      %p145 = scmp.eq.s32.totalorder %s23, 1
      %p146 = scmp.ne.s32.totalorder %s141, %s143
      %p147 = scmp.eq.s32.totalorder %s23, 0
      %p148 = por %p146, %p147
      %p149 = scmp.ne.s32.totalorder %s141, %s143
      %p150 = scmp.eq.s32.totalorder %s28, 1
      %p151 = por %p149, %p150
      %p152 = scmp.ne.s32.totalorder %s143, %s144
      %p153 = scmp.eq.s32.totalorder %s28, 0
      %p154 = por %p152, %p153
      %p155 = scmp.ne.s32.totalorder %s143, %s144
      %p156 = scmp.eq.s32.totalorder %s29, 1
      %p157 = por %p155, %p156
      %p159 = scmp.ne.s32.totalorder %s144, %s158
      %p160 = scmp.eq.s32.totalorder %s29, 0
      %p161 = por %p159, %p160
      %s163 = sadd.s32 %s162, 1
      %p166 = scmp.eq.s32.totalorder %s23, 1
      %p167 = scmp.ne.s32.totalorder %s162, %s164
      %p168 = scmp.eq.s32.totalorder %s23, 0
      %p169 = por %p167, %p168
      %p170 = scmp.ne.s32.totalorder %s162, %s164
      %p171 = scmp.eq.s32.totalorder %s28, 1
      %p172 = por %p170, %p171
      %p173 = scmp.ne.s32.totalorder %s164, %s165
      %p174 = scmp.eq.s32.totalorder %s28, 0
      %p175 = por %p173, %p174
      %p176 = scmp.ne.s32.totalorder %s164, %s165
      %p177 = scmp.eq.s32.totalorder %s29, 1
      %p178 = por %p176, %p177
      %p180 = scmp.ne.s32.totalorder %s165, %s179
      %p181 = scmp.eq.s32.totalorder %s29, 0
      %p182 = por %p180, %p181
      %s184 = sadd.s32 %s183, 1
      %p187 = scmp.eq.s32.totalorder %s23, 1
      %p188 = scmp.ne.s32.totalorder %s183, %s185
      %p189 = scmp.eq.s32.totalorder %s23, 0
      %p190 = por %p188, %p189
      %p191 = scmp.ne.s32.totalorder %s183, %s185
      %p192 = scmp.eq.s32.totalorder %s28, 1
      %p193 = por %p191, %p192
      %p194 = scmp.ne.s32.totalorder %s185, %s186
      %p195 = scmp.eq.s32.totalorder %s28, 0
      %p196 = por %p194, %p195
      %p197 = scmp.ne.s32.totalorder %s185, %s186
      %p198 = scmp.eq.s32.totalorder %s29, 1
      %p199 = por %p197, %p198
      %p201 = scmp.ne.s32.totalorder %s186, %s200
      %p202 = scmp.eq.s32.totalorder %s29, 0
      %p203 = por %p201, %p202
      %s204 = ssub.s32 %s23, %s30
      %p205 = scmp.eq.s32.totalorder %s204, 0
      %s207 = sadd.s32 %s206, 1
      %s208 = scalar_select %p205, %s206, %s207
      %p211 = pneg %p205
      %p212 = scmp.eq.s32.totalorder %s23, 1
      %p213 = por %p211, %p212
      %p214 = scmp.ne.s32.totalorder %s206, %s209
      %p215 = scmp.eq.s32.totalorder %s23, 0
      %p216 = por %p214, %p215
      %p217 = scmp.ne.s32.totalorder %s206, %s209
      %p218 = scmp.eq.s32.totalorder %s28, 1
      %p219 = por %p217, %p218
      %p220 = scmp.ne.s32.totalorder %s209, %s210
      %p221 = scmp.eq.s32.totalorder %s28, 0
      %p222 = por %p220, %p221
      %p223 = scmp.ne.s32.totalorder %s209, %s210
      %p224 = scmp.eq.s32.totalorder %s29, 1
      %p225 = por %p223, %p224
      %p227 = scmp.ne.s32.totalorder %s210, %s226
      %p228 = scmp.eq.s32.totalorder %s29, 0
      %p229 = por %p227, %p228
      %p230 = scmp.le.s32.totalorder 1, %s23
      %p231 = scmp.lt.s32.totalorder %s23, 3
      %p232 = pnand %p230, %p231
      %p233 = pneg %p232
      // Predicated region
      $region9: #{tpu_custom_call.1} parent=5 // pred_check
        _
      $region10: #{tpu_custom_call.1} parent=5 // pred_check_branch
        %235 = sbr.rel (%p232) target = $region12
      $region11: #{tpu_custom_call.1} parent=5 // pred_region
        %s236 = ssub.s32 %s23, 1
        // Predicated region
        $region13: #{tpu_custom_call.1} parent=11 // pred_check
          %p237 = pneg %p70
        $region14: #{tpu_custom_call.1} parent=11 // pred_check_branch
          %239 = sbr.rel (%p237) target = $region16
        $region15: #{tpu_custom_call.1} parent=11 // pred_region
          %241 = vsyncadd [#allocation7], 0
          %s242 = sshll.u32 %s1, 4
          %s243 = int_to_ptr.hbm [resolvable:$true] %s242
          %s244 = sshll.u32 [#allocation6], 4
          %s245 = int_to_ptr.vmem [resolvable:$true] %s244
          %250 = dma.hbm_to_vmem [thread:$0]  %s243, 384, %s245, [#allocation7], 128, 128, 8
        $region16: #{tpu_custom_call.1} parent=11 // pred_fallthru
          _
        // Predicated region
        $region17: #{tpu_custom_call.1} parent=11 // pred_check
          %p251 = pneg %p91
        $region18: #{tpu_custom_call.1} parent=11 // pred_check_branch
          %253 = sbr.rel (%p251) target = $region20
        $region19: #{tpu_custom_call.1} parent=11 // pred_region
          %255 = vsyncadd [#allocation7], 0
          %s256 = sshll.u32 %s2, 4
          %s257 = int_to_ptr.hbm [resolvable:$true] %s256
          %s258 = sshll.u32 [#allocation8], 4
          %s259 = int_to_ptr.vmem [resolvable:$true] %s258
          %264 = dma.hbm_to_vmem [thread:$0]  %s257, 384, %s259, [#allocation7], 128, 128, 8
        $region20: #{tpu_custom_call.1} parent=11 // pred_fallthru
          _
        // Predicated region
        $region21: #{tpu_custom_call.1} parent=11 // pred_check
          %p265 = pneg %p112
        $region22: #{tpu_custom_call.1} parent=11 // pred_check_branch
          %267 = sbr.rel (%p265) target = $region24
        $region23: #{tpu_custom_call.1} parent=11 // pred_region
          _
        $region24: #{tpu_custom_call.1} parent=11 // pred_fallthru
          _
        // Predicated region
        $region25: #{tpu_custom_call.1} parent=11 // pred_check
          %p268 = pneg %p133
        $region26: #{tpu_custom_call.1} parent=11 // pred_check_branch
          %270 = sbr.rel (%p268) target = $region28
        $region27: #{tpu_custom_call.1} parent=11 // pred_region
          %272 = vsyncadd [#allocation10], 0
          %s274 = sshll.u32 %s4, 4
          %s275 = int_to_ptr.hbm [resolvable:$true] %s274
          %s276 = sshll.u32 [#allocation9], 4
          %s277 = int_to_ptr.vmem [resolvable:$true] %s276
          %279 = dma.hbm_to_vmem [thread:$0]  %s275, 32, %s277, [#allocation10]
        $region28: #{tpu_custom_call.1} parent=11 // pred_fallthru
          _
        // Predicated region
        $region29: #{tpu_custom_call.1} parent=11 // pred_check
          %p280 = pneg %p154
        $region30: #{tpu_custom_call.1} parent=11 // pred_check_branch
          %282 = sbr.rel (%p280) target = $region32
        $region31: #{tpu_custom_call.1} parent=11 // pred_region
          %284 = vsyncadd [#allocation10], 0
          %s285 = sshll.u32 %s5, 4
          %s286 = int_to_ptr.hbm [resolvable:$true] %s285
          %s287 = sshll.u32 [#allocation11], 4
          %s288 = int_to_ptr.vmem [resolvable:$true] %s287
          %293 = dma.hbm_to_vmem [thread:$0]  %s286, 512, %s288, [#allocation10], 128, 128, 8
        $region32: #{tpu_custom_call.1} parent=11 // pred_fallthru
          _
        // Predicated region
        $region33: #{tpu_custom_call.1} parent=11 // pred_check
          %p294 = pneg %p175
        $region34: #{tpu_custom_call.1} parent=11 // pred_check_branch
          %296 = sbr.rel (%p294) target = $region36
        $region35: #{tpu_custom_call.1} parent=11 // pred_region
          _
        $region36: #{tpu_custom_call.1} parent=11 // pred_fallthru
          _
        // Predicated region
        $region37: #{tpu_custom_call.1} parent=11 // pred_check
          %p297 = pneg %p196
        $region38: #{tpu_custom_call.1} parent=11 // pred_check_branch
          %299 = sbr.rel (%p297) target = $region40
        $region39: #{tpu_custom_call.1} parent=11 // pred_region
          %301 = vsyncadd [#allocation13], 0
          %s302 = sshll.u32 %s7, 4
          %s303 = int_to_ptr.hbm [resolvable:$true] %s302
          %s304 = sshll.u32 [#allocation12], 4
          %s305 = int_to_ptr.vmem [resolvable:$true] %s304
          %310 = dma.hbm_to_vmem [thread:$0]  %s303, 512, %s305, [#allocation13], 128, 128, 8
        $region40: #{tpu_custom_call.1} parent=11 // pred_fallthru
          _
      $region12: #{tpu_custom_call.1} parent=5 // pred_fallthru
        _
      %p311 = scmp.lt.s32.totalorder %s23, 2
      // Predicated region
      $region41: #{tpu_custom_call.1} parent=5 // pred_check
        %p312 = pneg %p311
      $region42: #{tpu_custom_call.1} parent=5 // pred_check_branch
        %314 = sbr.rel (%p312) target = $region44
      $region43: #{tpu_custom_call.1} parent=5 // pred_region
        // Predicated region
        $region45: #{tpu_custom_call.1} parent=43 // pred_check
          %p315 = pneg %p43
        $region46: #{tpu_custom_call.1} parent=43 // pred_check_branch
          %317 = sbr.rel (%p315) target = $region48
        $region47: #{tpu_custom_call.1} parent=43 // pred_region
          %s318 = sand.u32 %s33, 1
          %s319 = scalar_lea.sflag [#allocation4], %s318
          %s320 = sand.u32 %s33, 1
          %s321 = smul.addr %s320, 32
          %s322 = scalar_lea.vmem [#allocation3], %s321
          %s323 = smul.u32 2, %s23
          %325 = vsyncadd %s319, 0
          %s326 = smul.addr %s323, 2
          %s327 = smul.addr %s326, 8
          %s328 = scalar_lea.hbm %s0, %s327
          %s329 = sshll.u32 %s328, 4
          %s330 = int_to_ptr.hbm [resolvable:$true] %s329
          %s331 = sshll.u32 %s322, 4
          %s332 = int_to_ptr.vmem [resolvable:$true] %s331
          %337 = dma.hbm_to_vmem [thread:$0]  %s330, 512, %s332, %s319, 256, 256, 16
        $region48: #{tpu_custom_call.1} parent=43 // pred_fallthru
          _
      $region44: #{tpu_custom_call.1} parent=5 // pred_fallthru
        _
      %p338 = scmp.le.s32.totalorder 1, %s23
      %p339 = scmp.lt.s32.totalorder %s23, 3
      %p340 = pnand %p338, %p339
      %p341 = pneg %p340
      // Predicated region
      $region49: #{tpu_custom_call.1} parent=5 // pred_check
        _
      $region50: #{tpu_custom_call.1} parent=5 // pred_check_branch
        %343 = sbr.rel (%p340) target = $region52
      $region51: #{tpu_custom_call.1} parent=5 // pred_region
        %s344 = ssub.s32 %s23, 1
        %s345 = sand.u32 %s36, 1
        %s346 = scalar_lea.sflag [#allocation4], %s345
        %s347 = sand.u32 %s36, 1
        %s348 = smul.addr %s347, 32
        %s349 = scalar_lea.vmem [#allocation3], %s348
        // Predicated region
        $region53: #{tpu_custom_call.1} parent=51 // pred_check
          %p350 = pneg %p49
        $region54: #{tpu_custom_call.1} parent=51 // pred_check_branch
          %352 = sbr.rel (%p350) target = $region56
        $region55: #{tpu_custom_call.1} parent=51 // pred_region
          %354 = dma.done %s346, 512
        $region56: #{tpu_custom_call.1} parent=51 // pred_fallthru
          _
        // Predicated region
        $region57: #{tpu_custom_call.1} parent=51 // pred_check
          %p355 = pneg %p70
        $region58: #{tpu_custom_call.1} parent=51 // pred_check_branch
          %357 = sbr.rel (%p355) target = $region60
        $region59: #{tpu_custom_call.1} parent=51 // pred_region
          %359 = dma.done [#allocation7], 384
        $region60: #{tpu_custom_call.1} parent=51 // pred_fallthru
          _
        // Predicated region
        $region61: #{tpu_custom_call.1} parent=51 // pred_check
          %p360 = pneg %p91
        $region62: #{tpu_custom_call.1} parent=51 // pred_check_branch
          %362 = sbr.rel (%p360) target = $region64
        $region63: #{tpu_custom_call.1} parent=51 // pred_region
          %364 = dma.done [#allocation7], 384
        $region64: #{tpu_custom_call.1} parent=51 // pred_fallthru
          _
        // Predicated region
        $region65: #{tpu_custom_call.1} parent=51 // pred_check
          %p365 = pneg %p133
        $region66: #{tpu_custom_call.1} parent=51 // pred_check_branch
          %367 = sbr.rel (%p365) target = $region68
        $region67: #{tpu_custom_call.1} parent=51 // pred_region
          %369 = dma.done [#allocation10], 32
        $region68: #{tpu_custom_call.1} parent=51 // pred_fallthru
          _
        // Predicated region
        $region69: #{tpu_custom_call.1} parent=51 // pred_check
          %p370 = pneg %p154
        $region70: #{tpu_custom_call.1} parent=51 // pred_check_branch
          %372 = sbr.rel (%p370) target = $region72
        $region71: #{tpu_custom_call.1} parent=51 // pred_region
          %374 = dma.done [#allocation10], 512
        $region72: #{tpu_custom_call.1} parent=51 // pred_fallthru
          _
        // Predicated region
        $region73: #{tpu_custom_call.1} parent=51 // pred_check
          %p375 = pneg %p196
        $region74: #{tpu_custom_call.1} parent=51 // pred_check_branch
          %377 = sbr.rel (%p375) target = $region76
        $region75: #{tpu_custom_call.1} parent=51 // pred_region
          %379 = dma.done [#allocation13], 512
        $region76: #{tpu_custom_call.1} parent=51 // pred_fallthru
          _
        %s380 = sand.u32 %s36, 1
        %s381 = scalar_lea.sflag [#allocation4], %s380
        %s382 = sand.u32 %s36, 1
        %s383 = smul.addr %s382, 32
        %s384 = scalar_lea.vmem [#allocation3], %s383
        %p385 = pneg %p49
        %p386 = pneg %p46
        %p387 = pneg %p70
        %p388 = pneg %p67
        %p389 = pneg %p91
        %p390 = pneg %p88
        %p391 = pneg %p112
        %p392 = pneg %p109
        %p393 = pneg %p133
        %p394 = pneg %p130
        %p395 = pneg %p154
        %p396 = pneg %p151
        %p397 = pneg %p175
        %p398 = pneg %p172
        %p399 = pneg %p196
        %p400 = pneg %p193
        %p401 = pneg %p222
        %p402 = pneg %p219
        %s403 = sand.u32 %s209, 1
        %s404 = scalar_lea.sflag [#allocation5], %s403
        %s405 = sand.u32 %s209, 1
        %s406 = smul.addr %s405, 32
        %s407 = scalar_lea.vmem [#allocation14], %s406
        %s408 = smul.u32 2, %s28
        %s409 = smul.u32 2, %s28
        %410 = vst [vmem:[#allocation2] sm:$0x3] 0.0
        %411 = vst [vmem:[#allocation2 + $0x8] sm:$0x3] 0.0
        %412 = vst [vmem:[#allocation2 + $0x10] sm:$0x3] 0.0
        %413 = vst [vmem:[#allocation2 + $0x30] sm:$0x3] 0.0
        %414 = vst [vmem:[#allocation2 + $0x38] sm:$0x3] 0.0
        %415 = vst [vmem:[#allocation2 + $0x40] sm:$0x3] 0.0
        %416 = vst [vmem:[#allocation2 + $0x18] sm:$0xc] 0.0
        %417 = vst [vmem:[#allocation2 + $0x20] sm:$0xc] 0.0
        %418 = vst [vmem:[#allocation2 + $0x28] sm:$0xc] 0.0
        %419 = vst [vmem:[#allocation2 + $0x48] sm:$0xc] 0.0
        %420 = vst [vmem:[#allocation2 + $0x50] sm:$0xc] 0.0
        %421 = vst [vmem:[#allocation2 + $0x58] sm:$0xc] 0.0
        %vm422 = vcmask 523266
        %423 = vst.msk [vmem:[#allocation2] sm:$0xfc] %vm422, 0.0
        %vm424 = vcmask 517120
        %425 = vst.msk [vmem:[#allocation2 + $0x18] sm:$0x3] %vm424, 0.0
        %426 = vst.msk [vmem:[#allocation2 + $0x30] sm:$0xfc] %vm422, 0.0
        %427 = vst.msk [vmem:[#allocation2 + $0x48] sm:$0x3] %vm424, 0.0
        %vm428 = vcmask 1048066
        %429 = vst.msk [vmem:[#allocation2 + $0x10] sm:$0xfc] %vm428, 0.0
        %vm430 = vcmask 1041920
        %431 = vst.msk [vmem:[#allocation2 + $0x28] sm:$0x3] %vm430, 0.0
        %432 = vst.msk [vmem:[#allocation2 + $0x40] sm:$0xfc] %vm428, 0.0
        %433 = vst.msk [vmem:[#allocation2 + $0x58] sm:$0x3] %vm430, 0.0
        %v434 = vld [vmem:[%s349] sm:$0xff]
        %v435 = vld [vmem:[%s349 + $0x8] sm:$0xff]
        %v436 = vld [vmem:[%s349 + $0x10] sm:$0xff]
        %v437 = vld [vmem:[%s349 + $0x18] sm:$0xff]
        %v442 = vrot.slane %v434, 6
        %v443 = vrot.slane %v435, 6
        %v444 = vrot.slane %v436, 6
        %v445 = vrot.slane %v437, 6
        %446 = vrot.lane.b32.xlu0 %v442, 64
        %v447 = vpop.permute.xlu0 %446
        %448 = vrot.lane.b32.xlu0 %v443, 64
        %v449 = vpop.permute.xlu0 %448
        %450 = vrot.lane.b32.xlu0 %v444, 64
        %v451 = vpop.permute.xlu0 %450
        %452 = vrot.lane.b32.xlu0 %v445, 64
        %v453 = vpop.permute.xlu0 %452
        %vm454 = vcmask 523264
        %v455 = vsel %vm454, %v447, %v449
        %v456 = vsel %vm454, %v451, %v453
        %463 = vst.msk [vmem:[#allocation2] sm:$0xfc] %vm428, %v447
        %464 = vst [vmem:[#allocation2 + $0x8] sm:$0xfc] %v455
        %465 = vst.msk [vmem:[#allocation2 + $0x10] sm:$0xfc] %vm422, %v449
        %466 = vst.msk [vmem:[#allocation2 + $0x18] sm:$0x3] %vm430, %v447
        %467 = vst [vmem:[#allocation2 + $0x20] sm:$0x3] %v455
        %468 = vst.msk [vmem:[#allocation2 + $0x28] sm:$0x3] %vm424, %v449
        %469 = vst.msk [vmem:[#allocation2 + $0x30] sm:$0xfc] %vm428, %v451
        %470 = vst [vmem:[#allocation2 + $0x38] sm:$0xfc] %v456
        %471 = vst.msk [vmem:[#allocation2 + $0x40] sm:$0xfc] %vm422, %v453
        %472 = vst.msk [vmem:[#allocation2 + $0x48] sm:$0x3] %vm430, %v451
        %473 = vst [vmem:[#allocation2 + $0x50] sm:$0x3] %v456
        %474 = vst.msk [vmem:[#allocation2 + $0x58] sm:$0x3] %vm424, %v453
        %v475 = vld [vmem:[#allocation6] sm:$0x77]
        %v476 = vld [vmem:[#allocation6 + $0x8] sm:$0x77]
        %v477 = vld [vmem:[#allocation6 + $0x10] sm:$0x77]
        %v478 = vld [vmem:[#allocation2] sm:$0xfe]
        %v479 = vld [vmem:[#allocation2 + $0x8] sm:$0xfe]
        %v480 = vld [vmem:[#allocation2 + $0x10] sm:$0xfe]
        %v481 = vld [vmem:[#allocation2 + $0x18] sm:$0x1]
        %v482 = vld [vmem:[#allocation2 + $0x20] sm:$0x1]
        %v483 = vld [vmem:[#allocation2 + $0x28] sm:$0x1]
        %v484 = vld [vmem:[#allocation2 + $0x30] sm:$0xfe]
        %v485 = vld [vmem:[#allocation2 + $0x38] sm:$0xfe]
        %v486 = vld [vmem:[#allocation2 + $0x40] sm:$0xfe]
        %v487 = vld [vmem:[#allocation2 + $0x48] sm:$0x1]
        %v488 = vld [vmem:[#allocation2 + $0x50] sm:$0x1]
        %v489 = vld [vmem:[#allocation2 + $0x58] sm:$0x1]
        %v491 = vperm.slane %v475, 0
        %v492 = vperm.slane %v475, 4
        %v495 = vperm.slane %v491, 0
        %v496 = vperm.slane %v492, 0
        %499 = vrot.lane.b32.xlu0 %v495, 32
        %v500 = vpop.permute.xlu0 %499
        %501 = vrot.lane.b32.xlu0 %v496, 32
        %v502 = vpop.permute.xlu0 %501
        %vm503 = vcmask 261120
        %v504 = vsel %vm503, %v500, %v502
        %v508 = vmul.f32 %v478, %v500
        %v509 = vmul.f32 %v479, %v504
        %v510 = vmul.f32 %v480, %v502
        %v511 = vmul.f32 %v481, %v500
        %v512 = vmul.f32 %v482, %v504
        %v513 = vmul.f32 %v483, %v502
        %v514 = vmul.f32 %v484, %v500
        %v515 = vmul.f32 %v485, %v504
        %v516 = vmul.f32 %v486, %v502
        %v517 = vmul.f32 %v487, %v500
        %v518 = vmul.f32 %v488, %v504
        %v519 = vmul.f32 %v489, %v502
        %v520 = vperm.slane %v475, 1
        %v521 = vperm.slane %v475, 5
        %v524 = vperm.slane %v520, 1
        %v525 = vperm.slane %v521, 1
        %528 = vrot.lane.b32.xlu0 %v524, 64
        %v529 = vpop.permute.xlu0 %528
        %530 = vrot.lane.b32.xlu0 %v525, 64
        %v531 = vpop.permute.xlu0 %530
        %v532 = vsel %vm454, %v529, %v531
        %v536 = vmul.f32 %v478, %v529
        %v537 = vmul.f32 %v479, %v532
        %v538 = vmul.f32 %v480, %v531
        %v539 = vmul.f32 %v481, %v529
        %v540 = vmul.f32 %v482, %v532
        %v541 = vmul.f32 %v483, %v531
        %v542 = vmul.f32 %v484, %v529
        %v543 = vmul.f32 %v485, %v532
        %v544 = vmul.f32 %v486, %v531
        %v545 = vmul.f32 %v487, %v529
        %v546 = vmul.f32 %v488, %v532
        %v547 = vmul.f32 %v489, %v531
        %560 = vrot.lane.b32.xlu0 %v536, 96
        %v561 = vpop.permute.xlu0 %560
        %562 = vrot.lane.b32.xlu0 %v537, 96
        %v563 = vpop.permute.xlu0 %562
        %564 = vrot.lane.b32.xlu0 %v538, 96
        %v565 = vpop.permute.xlu0 %564
        %566 = vrot.lane.b32.xlu0 %v539, 96
        %v567 = vpop.permute.xlu0 %566
        %568 = vrot.lane.b32.xlu0 %v540, 96
        %v569 = vpop.permute.xlu0 %568
        %570 = vrot.lane.b32.xlu0 %v541, 96
        %v571 = vpop.permute.xlu0 %570
        %572 = vrot.lane.b32.xlu0 %v542, 96
        %v573 = vpop.permute.xlu0 %572
        %574 = vrot.lane.b32.xlu0 %v543, 96
        %v575 = vpop.permute.xlu0 %574
        %576 = vrot.lane.b32.xlu0 %v544, 96
        %v577 = vpop.permute.xlu0 %576
        %578 = vrot.lane.b32.xlu0 %v545, 96
        %v579 = vpop.permute.xlu0 %578
        %580 = vrot.lane.b32.xlu0 %v546, 96
        %v581 = vpop.permute.xlu0 %580
        %582 = vrot.lane.b32.xlu0 %v547, 96
        %v583 = vpop.permute.xlu0 %582
        %vm584 = vcmask 785408
        %v585 = vsel %vm584, %v561, %v563
        %v586 = vsel %vm584, %v563, %v565
        %v587 = vsel %vm584, %v567, %v569
        %v588 = vsel %vm584, %v569, %v571
        %v589 = vsel %vm584, %v573, %v575
        %v590 = vsel %vm584, %v575, %v577
        %v591 = vsel %vm584, %v579, %v581
        %v592 = vsel %vm584, %v581, %v583
        %v605 = vadd.f32 %v508, %v585
        %v606 = vadd.f32 %v509, %v586
        %v607 = vadd.f32 %v510, %v565
        %v608 = vadd.f32 %v511, %v587
        %v609 = vadd.f32 %v512, %v588
        %v610 = vadd.f32 %v513, %v571
        %v611 = vadd.f32 %v514, %v589
        %v612 = vadd.f32 %v515, %v590
        %v613 = vadd.f32 %v516, %v577
        %v614 = vadd.f32 %v517, %v591
        %v615 = vadd.f32 %v518, %v592
        %v616 = vadd.f32 %v519, %v583
        %v617 = vperm.slane %v475, 2
        %v618 = vperm.slane %v475, 6
        %v621 = vperm.slane %v617, 2
        %v622 = vperm.slane %v618, 2
        %625 = vrot.lane.b32.xlu0 %v621, 96
        %v626 = vpop.permute.xlu0 %625
        %627 = vrot.lane.b32.xlu0 %v622, 96
        %v628 = vpop.permute.xlu0 %627
        %v629 = vsel %vm584, %v626, %v628
        %v633 = vmul.f32 %v478, %v626
        %v634 = vmul.f32 %v479, %v629
        %v635 = vmul.f32 %v480, %v628
        %v636 = vmul.f32 %v481, %v626
        %v637 = vmul.f32 %v482, %v629
        %v638 = vmul.f32 %v483, %v628
        %v639 = vmul.f32 %v484, %v626
        %v640 = vmul.f32 %v485, %v629
        %v641 = vmul.f32 %v486, %v628
        %v642 = vmul.f32 %v487, %v626
        %v643 = vmul.f32 %v488, %v629
        %v644 = vmul.f32 %v489, %v628
        %657 = vrot.lane.b32.xlu0 %v633, 64
        %v658 = vpop.permute.xlu0 %657
        %659 = vrot.lane.b32.xlu0 %v634, 64
        %v660 = vpop.permute.xlu0 %659
        %661 = vrot.lane.b32.xlu0 %v635, 64
        %v662 = vpop.permute.xlu0 %661
        %663 = vrot.lane.b32.xlu0 %v636, 64
        %v664 = vpop.permute.xlu0 %663
        %665 = vrot.lane.b32.xlu0 %v637, 64
        %v666 = vpop.permute.xlu0 %665
        %667 = vrot.lane.b32.xlu0 %v638, 64
        %v668 = vpop.permute.xlu0 %667
        %669 = vrot.lane.b32.xlu0 %v639, 64
        %v670 = vpop.permute.xlu0 %669
        %671 = vrot.lane.b32.xlu0 %v640, 64
        %v672 = vpop.permute.xlu0 %671
        %673 = vrot.lane.b32.xlu0 %v641, 64
        %v674 = vpop.permute.xlu0 %673
        %675 = vrot.lane.b32.xlu0 %v642, 64
        %v676 = vpop.permute.xlu0 %675
        %677 = vrot.lane.b32.xlu0 %v643, 64
        %v678 = vpop.permute.xlu0 %677
        %679 = vrot.lane.b32.xlu0 %v644, 64
        %v680 = vpop.permute.xlu0 %679
        %v681 = vsel %vm454, %v658, %v660
        %v682 = vsel %vm454, %v660, %v662
        %v683 = vsel %vm454, %v664, %v666
        %v684 = vsel %vm454, %v666, %v668
        %v685 = vsel %vm454, %v670, %v672
        %v686 = vsel %vm454, %v672, %v674
        %v687 = vsel %vm454, %v676, %v678
        %v688 = vsel %vm454, %v678, %v680
        %v701 = vadd.f32 %v605, %v681
        %v702 = vadd.f32 %v606, %v682
        %v703 = vadd.f32 %v607, %v662
        %v704 = vadd.f32 %v608, %v683
        %v705 = vadd.f32 %v609, %v684
        %v706 = vadd.f32 %v610, %v668
        %v707 = vadd.f32 %v611, %v685
        %v708 = vadd.f32 %v612, %v686
        %v709 = vadd.f32 %v613, %v674
        %v710 = vadd.f32 %v614, %v687
        %v711 = vadd.f32 %v615, %v688
        %v712 = vadd.f32 %v616, %v680
        %v713 = vld [vmem:[#allocation2] sm:$0xfc]
        %v714 = vld [vmem:[#allocation2 + $0x8] sm:$0xfc]
        %v715 = vld [vmem:[#allocation2 + $0x10] sm:$0xfc]
        %v716 = vld [vmem:[#allocation2 + $0x18] sm:$0x3]
        %v717 = vld [vmem:[#allocation2 + $0x20] sm:$0x3]
        %v718 = vld [vmem:[#allocation2 + $0x28] sm:$0x3]
        %v719 = vld [vmem:[#allocation2 + $0x30] sm:$0xfc]
        %v720 = vld [vmem:[#allocation2 + $0x38] sm:$0xfc]
        %v721 = vld [vmem:[#allocation2 + $0x40] sm:$0xfc]
        %v722 = vld [vmem:[#allocation2 + $0x48] sm:$0x3]
        %v723 = vld [vmem:[#allocation2 + $0x50] sm:$0x3]
        %v724 = vld [vmem:[#allocation2 + $0x58] sm:$0x3]
        %v726 = vperm.slane %v476, 0
        %v727 = vperm.slane %v476, 4
        %v730 = vperm.slane %v726, 0
        %v731 = vperm.slane %v727, 0
        %734 = vrot.lane.b32.xlu0 %v730, 32
        %v735 = vpop.permute.xlu0 %734
        %736 = vrot.lane.b32.xlu0 %v731, 32
        %v737 = vpop.permute.xlu0 %736
        %v738 = vsel %vm503, %v735, %v737
        %v742 = vmul.f32 %v713, %v735
        %v743 = vmul.f32 %v714, %v738
        %v744 = vmul.f32 %v715, %v737
        %v745 = vmul.f32 %v716, %v735
        %v746 = vmul.f32 %v717, %v738
        %v747 = vmul.f32 %v718, %v737
        %v748 = vmul.f32 %v719, %v735
        %v749 = vmul.f32 %v720, %v738
        %v750 = vmul.f32 %v721, %v737
        %v751 = vmul.f32 %v722, %v735
        %v752 = vmul.f32 %v723, %v738
        %v753 = vmul.f32 %v724, %v737
        %vm766 = vcmask 1046528
        %v767 = vrot.slane %v742, 1
        %v768 = vrot.slane %v745, 1
        %v769 = vsel %vm766, %v767, %v768
        %v770 = vrot.slane %v743, 1
        %v771 = vrot.slane %v746, 1
        %v772 = vsel %vm766, %v770, %v771
        %v773 = vrot.slane %v744, 1
        %v774 = vrot.slane %v747, 1
        %v775 = vsel %vm766, %v773, %v774
        %v776 = vrot.slane %v748, 1
        %v777 = vrot.slane %v751, 1
        %v778 = vsel %vm766, %v776, %v777
        %v779 = vrot.slane %v749, 1
        %v780 = vrot.slane %v752, 1
        %v781 = vsel %vm766, %v779, %v780
        %v782 = vrot.slane %v750, 1
        %v783 = vrot.slane %v753, 1
        %v784 = vsel %vm766, %v782, %v783
        %v797 = vadd.f32 %v701, %v769
        %v798 = vadd.f32 %v702, %v772
        %v799 = vadd.f32 %v703, %v775
        %v800 = vadd.f32 %v704, %v768
        %v801 = vadd.f32 %v705, %v771
        %v802 = vadd.f32 %v706, %v774
        %v803 = vadd.f32 %v707, %v778
        %v804 = vadd.f32 %v708, %v781
        %v805 = vadd.f32 %v709, %v784
        %v806 = vadd.f32 %v710, %v777
        %v807 = vadd.f32 %v711, %v780
        %v808 = vadd.f32 %v712, %v783
        %v809 = vperm.slane %v476, 1
        %v810 = vperm.slane %v476, 5
        %v813 = vperm.slane %v809, 1
        %v814 = vperm.slane %v810, 1
        %817 = vrot.lane.b32.xlu0 %v813, 64
        %v818 = vpop.permute.xlu0 %817
        %819 = vrot.lane.b32.xlu0 %v814, 64
        %v820 = vpop.permute.xlu0 %819
        %v821 = vsel %vm454, %v818, %v820
        %v825 = vmul.f32 %v713, %v818
        %v826 = vmul.f32 %v714, %v821
        %v827 = vmul.f32 %v715, %v820
        %v828 = vmul.f32 %v716, %v818
        %v829 = vmul.f32 %v717, %v821
        %v830 = vmul.f32 %v718, %v820
        %v831 = vmul.f32 %v719, %v818
        %v832 = vmul.f32 %v720, %v821
        %v833 = vmul.f32 %v721, %v820
        %v834 = vmul.f32 %v722, %v818
        %v835 = vmul.f32 %v723, %v821
        %v836 = vmul.f32 %v724, %v820
        %v849 = vrot.slane %v825, 1
        %v850 = vrot.slane %v828, 1
        %v851 = vsel %vm766, %v849, %v850
        %v852 = vrot.slane %v826, 1
        %v853 = vrot.slane %v829, 1
        %v854 = vsel %vm766, %v852, %v853
        %v855 = vrot.slane %v827, 1
        %v856 = vrot.slane %v830, 1
        %v857 = vsel %vm766, %v855, %v856
        %v858 = vrot.slane %v831, 1
        %v859 = vrot.slane %v834, 1
        %v860 = vsel %vm766, %v858, %v859
        %v861 = vrot.slane %v832, 1
        %v862 = vrot.slane %v835, 1
        %v863 = vsel %vm766, %v861, %v862
        %v864 = vrot.slane %v833, 1
        %v865 = vrot.slane %v836, 1
        %v866 = vsel %vm766, %v864, %v865
        %867 = vrot.lane.b32.xlu0 %v851, 96
        %v868 = vpop.permute.xlu0 %867
        %869 = vrot.lane.b32.xlu0 %v854, 96
        %v870 = vpop.permute.xlu0 %869
        %871 = vrot.lane.b32.xlu0 %v857, 96
        %v872 = vpop.permute.xlu0 %871
        %873 = vrot.lane.b32.xlu0 %v850, 96
        %v874 = vpop.permute.xlu0 %873
        %875 = vrot.lane.b32.xlu0 %v853, 96
        %v876 = vpop.permute.xlu0 %875
        %877 = vrot.lane.b32.xlu0 %v856, 96
        %v878 = vpop.permute.xlu0 %877
        %879 = vrot.lane.b32.xlu0 %v860, 96
        %v880 = vpop.permute.xlu0 %879
        %881 = vrot.lane.b32.xlu0 %v863, 96
        %v882 = vpop.permute.xlu0 %881
        %883 = vrot.lane.b32.xlu0 %v866, 96
        %v884 = vpop.permute.xlu0 %883
        %885 = vrot.lane.b32.xlu0 %v859, 96
        %v886 = vpop.permute.xlu0 %885
        %887 = vrot.lane.b32.xlu0 %v862, 96
        %v888 = vpop.permute.xlu0 %887
        %889 = vrot.lane.b32.xlu0 %v865, 96
        %v890 = vpop.permute.xlu0 %889
        %v891 = vsel %vm584, %v868, %v870
        %v892 = vsel %vm584, %v870, %v872
        %v893 = vsel %vm584, %v874, %v876
        %v894 = vsel %vm584, %v876, %v878
        %v895 = vsel %vm584, %v880, %v882
        %v896 = vsel %vm584, %v882, %v884
        %v897 = vsel %vm584, %v886, %v888
        %v898 = vsel %vm584, %v888, %v890
        %v911 = vadd.f32 %v797, %v891
        %v912 = vadd.f32 %v798, %v892
        %v913 = vadd.f32 %v799, %v872
        %v914 = vadd.f32 %v800, %v893
        %v915 = vadd.f32 %v801, %v894
        %v916 = vadd.f32 %v802, %v878
        %v917 = vadd.f32 %v803, %v895
        %v918 = vadd.f32 %v804, %v896
        %v919 = vadd.f32 %v805, %v884
        %v920 = vadd.f32 %v806, %v897
        %v921 = vadd.f32 %v807, %v898
        %v922 = vadd.f32 %v808, %v890
        %v923 = vperm.slane %v476, 2
        %v924 = vperm.slane %v476, 6
        %v927 = vperm.slane %v923, 2
        %v928 = vperm.slane %v924, 2
        %931 = vrot.lane.b32.xlu0 %v927, 96
        %v932 = vpop.permute.xlu0 %931
        %933 = vrot.lane.b32.xlu0 %v928, 96
        %v934 = vpop.permute.xlu0 %933
        %v935 = vsel %vm584, %v932, %v934
        %v939 = vmul.f32 %v713, %v932
        %v940 = vmul.f32 %v714, %v935
        %v941 = vmul.f32 %v715, %v934
        %v942 = vmul.f32 %v716, %v932
        %v943 = vmul.f32 %v717, %v935
        %v944 = vmul.f32 %v718, %v934
        %v945 = vmul.f32 %v719, %v932
        %v946 = vmul.f32 %v720, %v935
        %v947 = vmul.f32 %v721, %v934
        %v948 = vmul.f32 %v722, %v932
        %v949 = vmul.f32 %v723, %v935
        %v950 = vmul.f32 %v724, %v934
        %v963 = vrot.slane %v939, 1
        %v964 = vrot.slane %v942, 1
        %v965 = vsel %vm766, %v963, %v964
        %v966 = vrot.slane %v940, 1
        %v967 = vrot.slane %v943, 1
        %v968 = vsel %vm766, %v966, %v967
        %v969 = vrot.slane %v941, 1
        %v970 = vrot.slane %v944, 1
        %v971 = vsel %vm766, %v969, %v970
        %v972 = vrot.slane %v945, 1
        %v973 = vrot.slane %v948, 1
        %v974 = vsel %vm766, %v972, %v973
        %v975 = vrot.slane %v946, 1
        %v976 = vrot.slane %v949, 1
        %v977 = vsel %vm766, %v975, %v976
        %v978 = vrot.slane %v947, 1
        %v979 = vrot.slane %v950, 1
        %v980 = vsel %vm766, %v978, %v979
        %981 = vrot.lane.b32.xlu0 %v965, 64
        %v982 = vpop.permute.xlu0 %981
        %983 = vrot.lane.b32.xlu0 %v968, 64
        %v984 = vpop.permute.xlu0 %983
        %985 = vrot.lane.b32.xlu0 %v971, 64
        %v986 = vpop.permute.xlu0 %985
        %987 = vrot.lane.b32.xlu0 %v964, 64
        %v988 = vpop.permute.xlu0 %987
        %989 = vrot.lane.b32.xlu0 %v967, 64
        %v990 = vpop.permute.xlu0 %989
        %991 = vrot.lane.b32.xlu0 %v970, 64
        %v992 = vpop.permute.xlu0 %991
        %993 = vrot.lane.b32.xlu0 %v974, 64
        %v994 = vpop.permute.xlu0 %993
        %995 = vrot.lane.b32.xlu0 %v977, 64
        %v996 = vpop.permute.xlu0 %995
        %997 = vrot.lane.b32.xlu0 %v980, 64
        %v998 = vpop.permute.xlu0 %997
        %999 = vrot.lane.b32.xlu0 %v973, 64
        %v1000 = vpop.permute.xlu0 %999
        %1001 = vrot.lane.b32.xlu0 %v976, 64
        %v1002 = vpop.permute.xlu0 %1001
        %1003 = vrot.lane.b32.xlu0 %v979, 64
        %v1004 = vpop.permute.xlu0 %1003
        %v1005 = vsel %vm454, %v982, %v984
        %v1006 = vsel %vm454, %v984, %v986
        %v1007 = vsel %vm454, %v988, %v990
        %v1008 = vsel %vm454, %v990, %v992
        %v1009 = vsel %vm454, %v994, %v996
        %v1010 = vsel %vm454, %v996, %v998
        %v1011 = vsel %vm454, %v1000, %v1002
        %v1012 = vsel %vm454, %v1002, %v1004
        %v1025 = vadd.f32 %v911, %v1005
        %v1026 = vadd.f32 %v912, %v1006
        %v1027 = vadd.f32 %v913, %v986
        %v1028 = vadd.f32 %v914, %v1007
        %v1029 = vadd.f32 %v915, %v1008
        %v1030 = vadd.f32 %v916, %v992
        %v1031 = vadd.f32 %v917, %v1009
        %v1032 = vadd.f32 %v918, %v1010
        %v1033 = vadd.f32 %v919, %v998
        %v1034 = vadd.f32 %v920, %v1011
        %v1035 = vadd.f32 %v921, %v1012
        %v1036 = vadd.f32 %v922, %v1004
        %v1037 = vld [vmem:[#allocation2] sm:$0xf8]
        %v1038 = vld [vmem:[#allocation2 + $0x8] sm:$0xf8]
        %v1039 = vld [vmem:[#allocation2 + $0x10] sm:$0xf8]
        %v1040 = vld [vmem:[#allocation2 + $0x18] sm:$0x7]
        %v1041 = vld [vmem:[#allocation2 + $0x20] sm:$0x7]
        %v1042 = vld [vmem:[#allocation2 + $0x28] sm:$0x7]
        %v1043 = vld [vmem:[#allocation2 + $0x30] sm:$0xf8]
        %v1044 = vld [vmem:[#allocation2 + $0x38] sm:$0xf8]
        %v1045 = vld [vmem:[#allocation2 + $0x40] sm:$0xf8]
        %v1046 = vld [vmem:[#allocation2 + $0x48] sm:$0x7]
        %v1047 = vld [vmem:[#allocation2 + $0x50] sm:$0x7]
        %v1048 = vld [vmem:[#allocation2 + $0x58] sm:$0x7]
        %v1050 = vperm.slane %v477, 0
        %v1051 = vperm.slane %v477, 4
        %v1054 = vperm.slane %v1050, 0
        %v1055 = vperm.slane %v1051, 0
        %1058 = vrot.lane.b32.xlu0 %v1054, 32
        %v1059 = vpop.permute.xlu0 %1058
        %1060 = vrot.lane.b32.xlu0 %v1055, 32
        %v1061 = vpop.permute.xlu0 %1060
        %v1062 = vsel %vm503, %v1059, %v1061
        %v1066 = vmul.f32 %v1037, %v1059
        %v1067 = vmul.f32 %v1038, %v1062
        %v1068 = vmul.f32 %v1039, %v1061
        %v1069 = vmul.f32 %v1040, %v1059
        %v1070 = vmul.f32 %v1041, %v1062
        %v1071 = vmul.f32 %v1042, %v1061
        %v1072 = vmul.f32 %v1043, %v1059
        %v1073 = vmul.f32 %v1044, %v1062
        %v1074 = vmul.f32 %v1045, %v1061
        %v1075 = vmul.f32 %v1046, %v1059
        %v1076 = vmul.f32 %v1047, %v1062
        %v1077 = vmul.f32 %v1048, %v1061
        %vm1090 = vcmask 1045504
        %v1091 = vrot.slane %v1066, 2
        %v1092 = vrot.slane %v1069, 2
        %v1093 = vsel %vm1090, %v1091, %v1092
        %v1094 = vrot.slane %v1067, 2
        %v1095 = vrot.slane %v1070, 2
        %v1096 = vsel %vm1090, %v1094, %v1095
        %v1097 = vrot.slane %v1068, 2
        %v1098 = vrot.slane %v1071, 2
        %v1099 = vsel %vm1090, %v1097, %v1098
        %v1100 = vrot.slane %v1072, 2
        %v1101 = vrot.slane %v1075, 2
        %v1102 = vsel %vm1090, %v1100, %v1101
        %v1103 = vrot.slane %v1073, 2
        %v1104 = vrot.slane %v1076, 2
        %v1105 = vsel %vm1090, %v1103, %v1104
        %v1106 = vrot.slane %v1074, 2
        %v1107 = vrot.slane %v1077, 2
        %v1108 = vsel %vm1090, %v1106, %v1107
        %v1121 = vadd.f32 %v1025, %v1093
        %v1122 = vadd.f32 %v1026, %v1096
        %v1123 = vadd.f32 %v1027, %v1099
        %v1124 = vadd.f32 %v1028, %v1092
        %v1125 = vadd.f32 %v1029, %v1095
        %v1126 = vadd.f32 %v1030, %v1098
        %v1127 = vadd.f32 %v1031, %v1102
        %v1128 = vadd.f32 %v1032, %v1105
        %v1129 = vadd.f32 %v1033, %v1108
        %v1130 = vadd.f32 %v1034, %v1101
        %v1131 = vadd.f32 %v1035, %v1104
        %v1132 = vadd.f32 %v1036, %v1107
        %v1133 = vperm.slane %v477, 1
        %v1134 = vperm.slane %v477, 5
        %v1137 = vperm.slane %v1133, 1
        %v1138 = vperm.slane %v1134, 1
        %1141 = vrot.lane.b32.xlu0 %v1137, 64
        %v1142 = vpop.permute.xlu0 %1141
        %1143 = vrot.lane.b32.xlu0 %v1138, 64
        %v1144 = vpop.permute.xlu0 %1143
        %v1145 = vsel %vm454, %v1142, %v1144
        %v1149 = vmul.f32 %v1037, %v1142
        %v1150 = vmul.f32 %v1038, %v1145
        %v1151 = vmul.f32 %v1039, %v1144
        %v1152 = vmul.f32 %v1040, %v1142
        %v1153 = vmul.f32 %v1041, %v1145
        %v1154 = vmul.f32 %v1042, %v1144
        %v1155 = vmul.f32 %v1043, %v1142
        %v1156 = vmul.f32 %v1044, %v1145
        %v1157 = vmul.f32 %v1045, %v1144
        %v1158 = vmul.f32 %v1046, %v1142
        %v1159 = vmul.f32 %v1047, %v1145
        %v1160 = vmul.f32 %v1048, %v1144
        %v1173 = vrot.slane %v1149, 2
        %v1174 = vrot.slane %v1152, 2
        %v1175 = vsel %vm1090, %v1173, %v1174
        %v1176 = vrot.slane %v1150, 2
        %v1177 = vrot.slane %v1153, 2
        %v1178 = vsel %vm1090, %v1176, %v1177
        %v1179 = vrot.slane %v1151, 2
        %v1180 = vrot.slane %v1154, 2
        %v1181 = vsel %vm1090, %v1179, %v1180
        %v1182 = vrot.slane %v1155, 2
        %v1183 = vrot.slane %v1158, 2
        %v1184 = vsel %vm1090, %v1182, %v1183
        %v1185 = vrot.slane %v1156, 2
        %v1186 = vrot.slane %v1159, 2
        %v1187 = vsel %vm1090, %v1185, %v1186
        %v1188 = vrot.slane %v1157, 2
        %v1189 = vrot.slane %v1160, 2
        %v1190 = vsel %vm1090, %v1188, %v1189
        %1191 = vrot.lane.b32.xlu0 %v1175, 96
        %v1192 = vpop.permute.xlu0 %1191
        %1193 = vrot.lane.b32.xlu0 %v1178, 96
        %v1194 = vpop.permute.xlu0 %1193
        %1195 = vrot.lane.b32.xlu0 %v1181, 96
        %v1196 = vpop.permute.xlu0 %1195
        %1197 = vrot.lane.b32.xlu0 %v1174, 96
        %v1198 = vpop.permute.xlu0 %1197
        %1199 = vrot.lane.b32.xlu0 %v1177, 96
        %v1200 = vpop.permute.xlu0 %1199
        %1201 = vrot.lane.b32.xlu0 %v1180, 96
        %v1202 = vpop.permute.xlu0 %1201
        %1203 = vrot.lane.b32.xlu0 %v1184, 96
        %v1204 = vpop.permute.xlu0 %1203
        %1205 = vrot.lane.b32.xlu0 %v1187, 96
        %v1206 = vpop.permute.xlu0 %1205
        %1207 = vrot.lane.b32.xlu0 %v1190, 96
        %v1208 = vpop.permute.xlu0 %1207
        %1209 = vrot.lane.b32.xlu0 %v1183, 96
        %v1210 = vpop.permute.xlu0 %1209
        %1211 = vrot.lane.b32.xlu0 %v1186, 96
        %v1212 = vpop.permute.xlu0 %1211
        %1213 = vrot.lane.b32.xlu0 %v1189, 96
        %v1214 = vpop.permute.xlu0 %1213
        %v1215 = vsel %vm584, %v1192, %v1194
        %v1216 = vsel %vm584, %v1194, %v1196
        %v1217 = vsel %vm584, %v1198, %v1200
        %v1218 = vsel %vm584, %v1200, %v1202
        %v1219 = vsel %vm584, %v1204, %v1206
        %v1220 = vsel %vm584, %v1206, %v1208
        %v1221 = vsel %vm584, %v1210, %v1212
        %v1222 = vsel %vm584, %v1212, %v1214
        %v1235 = vadd.f32 %v1121, %v1215
        %v1236 = vadd.f32 %v1122, %v1216
        %v1237 = vadd.f32 %v1123, %v1196
        %v1238 = vadd.f32 %v1124, %v1217
        %v1239 = vadd.f32 %v1125, %v1218
        %v1240 = vadd.f32 %v1126, %v1202
        %v1241 = vadd.f32 %v1127, %v1219
        %v1242 = vadd.f32 %v1128, %v1220
        %v1243 = vadd.f32 %v1129, %v1208
        %v1244 = vadd.f32 %v1130, %v1221
        %v1245 = vadd.f32 %v1131, %v1222
        %v1246 = vadd.f32 %v1132, %v1214
        %v1247 = vperm.slane %v477, 2
        %v1248 = vperm.slane %v477, 6
        %v1251 = vperm.slane %v1247, 2
        %v1252 = vperm.slane %v1248, 2
        %1255 = vrot.lane.b32.xlu0 %v1251, 96
        %v1256 = vpop.permute.xlu0 %1255
        %1257 = vrot.lane.b32.xlu0 %v1252, 96
        %v1258 = vpop.permute.xlu0 %1257
        %v1259 = vsel %vm584, %v1256, %v1258
        %v1263 = vmul.f32 %v1037, %v1256
        %v1264 = vmul.f32 %v1038, %v1259
        %v1265 = vmul.f32 %v1039, %v1258
        %v1266 = vmul.f32 %v1040, %v1256
        %v1267 = vmul.f32 %v1041, %v1259
        %v1268 = vmul.f32 %v1042, %v1258
        %v1269 = vmul.f32 %v1043, %v1256
        %v1270 = vmul.f32 %v1044, %v1259
        %v1271 = vmul.f32 %v1045, %v1258
        %v1272 = vmul.f32 %v1046, %v1256
        %v1273 = vmul.f32 %v1047, %v1259
        %v1274 = vmul.f32 %v1048, %v1258
        %v1287 = vrot.slane %v1263, 2
        %v1288 = vrot.slane %v1266, 2
        %v1289 = vsel %vm1090, %v1287, %v1288
        %v1290 = vrot.slane %v1264, 2
        %v1291 = vrot.slane %v1267, 2
        %v1292 = vsel %vm1090, %v1290, %v1291
        %v1293 = vrot.slane %v1265, 2
        %v1294 = vrot.slane %v1268, 2
        %v1295 = vsel %vm1090, %v1293, %v1294
        %v1296 = vrot.slane %v1269, 2
        %v1297 = vrot.slane %v1272, 2
        %v1298 = vsel %vm1090, %v1296, %v1297
        %v1299 = vrot.slane %v1270, 2
        %v1300 = vrot.slane %v1273, 2
        %v1301 = vsel %vm1090, %v1299, %v1300
        %v1302 = vrot.slane %v1271, 2
        %v1303 = vrot.slane %v1274, 2
        %v1304 = vsel %vm1090, %v1302, %v1303
        %1305 = vrot.lane.b32.xlu0 %v1289, 64
        %v1306 = vpop.permute.xlu0 %1305
        %1307 = vrot.lane.b32.xlu0 %v1292, 64
        %v1308 = vpop.permute.xlu0 %1307
        %1309 = vrot.lane.b32.xlu0 %v1295, 64
        %v1310 = vpop.permute.xlu0 %1309
        %1311 = vrot.lane.b32.xlu0 %v1288, 64
        %v1312 = vpop.permute.xlu0 %1311
        %1313 = vrot.lane.b32.xlu0 %v1291, 64
        %v1314 = vpop.permute.xlu0 %1313
        %1315 = vrot.lane.b32.xlu0 %v1294, 64
        %v1316 = vpop.permute.xlu0 %1315
        %1317 = vrot.lane.b32.xlu0 %v1298, 64
        %v1318 = vpop.permute.xlu0 %1317
        %1319 = vrot.lane.b32.xlu0 %v1301, 64
        %v1320 = vpop.permute.xlu0 %1319
        %1321 = vrot.lane.b32.xlu0 %v1304, 64
        %v1322 = vpop.permute.xlu0 %1321
        %1323 = vrot.lane.b32.xlu0 %v1297, 64
        %v1324 = vpop.permute.xlu0 %1323
        %1325 = vrot.lane.b32.xlu0 %v1300, 64
        %v1326 = vpop.permute.xlu0 %1325
        %1327 = vrot.lane.b32.xlu0 %v1303, 64
        %v1328 = vpop.permute.xlu0 %1327
        %v1329 = vsel %vm454, %v1306, %v1308
        %v1330 = vsel %vm454, %v1308, %v1310
        %v1331 = vsel %vm454, %v1312, %v1314
        %v1332 = vsel %vm454, %v1314, %v1316
        %v1333 = vsel %vm454, %v1318, %v1320
        %v1334 = vsel %vm454, %v1320, %v1322
        %v1335 = vsel %vm454, %v1324, %v1326
        %v1336 = vsel %vm454, %v1326, %v1328
        %v1349 = vadd.f32 %v1235, %v1329
        %v1350 = vadd.f32 %v1236, %v1330
        %v1351 = vadd.f32 %v1237, %v1310
        %v1352 = vadd.f32 %v1238, %v1331
        %v1353 = vadd.f32 %v1239, %v1332
        %v1354 = vadd.f32 %v1240, %v1316
        %v1355 = vadd.f32 %v1241, %v1333
        %v1356 = vadd.f32 %v1242, %v1334
        %v1357 = vadd.f32 %v1243, %v1322
        %v1358 = vadd.f32 %v1244, %v1335
        %v1359 = vadd.f32 %v1245, %v1336
        %v1360 = vadd.f32 %v1246, %v1328
        %v1361 = vld [vmem:[%s3] sm:$0x3]
        %v1363 = vperm.slane %v1361, 0
        %v1364 = vperm.slane %v1361, 1
        %1365 = vrot.lane.b32.xlu0 %v1363, 32
        %v1366 = vpop.permute.xlu0 %1365
        %1367 = vrot.lane.b32.xlu0 %v1364, 32
        %v1368 = vpop.permute.xlu0 %1367
        %v1369 = vsel %vm503, %v1366, %v1368
        %v1373 = vadd.f32 %v1349, %v1366
        %v1374 = vadd.f32 %v1350, %v1369
        %v1375 = vadd.f32 %v1351, %v1368
        %v1376 = vadd.f32 %v1352, %v1366
        %v1377 = vadd.f32 %v1353, %v1369
        %v1378 = vadd.f32 %v1354, %v1368
        %v1379 = vadd.f32 %v1355, %v1366
        %v1380 = vadd.f32 %v1356, %v1369
        %v1381 = vadd.f32 %v1357, %v1368
        %v1382 = vadd.f32 %v1358, %v1366
        %v1383 = vadd.f32 %v1359, %v1369
        %v1384 = vadd.f32 %v1360, %v1368
        %v1385 = vmax.f32 %v1373, 0.0
        %v1386 = vmax.f32 %v1374, 0.0
        %v1387 = vmax.f32 %v1375, 0.0
        %v1388 = vmax.f32 %v1376, 0.0
        %v1389 = vmax.f32 %v1377, 0.0
        %v1390 = vmax.f32 %v1378, 0.0
        %v1391 = vmax.f32 %v1379, 0.0
        %v1392 = vmax.f32 %v1380, 0.0
        %v1393 = vmax.f32 %v1381, 0.0
        %v1394 = vmax.f32 %v1382, 0.0
        %v1395 = vmax.f32 %v1383, 0.0
        %v1396 = vmax.f32 %v1384, 0.0
        %v1397 = vld [vmem:[#allocation8] sm:$0x77]
        %v1398 = vld [vmem:[#allocation8 + $0x8] sm:$0x77]
        %v1399 = vld [vmem:[#allocation8 + $0x10] sm:$0x77]
        %v1400 = vld [vmem:[#allocation2] sm:$0xff]
        %v1401 = vld [vmem:[#allocation2 + $0x8] sm:$0xff]
        %v1402 = vld [vmem:[#allocation2 + $0x10] sm:$0xff]
        %v1403 = vld [vmem:[#allocation2 + $0x30] sm:$0xff]
        %v1404 = vld [vmem:[#allocation2 + $0x38] sm:$0xff]
        %v1405 = vld [vmem:[#allocation2 + $0x40] sm:$0xff]
        %v1407 = vperm.slane %v1397, 0
        %v1408 = vperm.slane %v1397, 4
        %v1411 = vperm.slane %v1407, 0
        %v1412 = vperm.slane %v1408, 0
        %v1413 = vmul.f32 %v1400, %v1411
        %v1414 = vmul.f32 %v1401, %v1412
        %v1415 = vmul.f32 %v1403, %v1411
        %v1416 = vmul.f32 %v1404, %v1412
        %v1417 = vperm.slane %v1397, 1
        %v1418 = vperm.slane %v1397, 5
        %v1421 = vperm.slane %v1417, 1
        %v1422 = vperm.slane %v1418, 1
        %1425 = vrot.lane.b32.xlu0 %v1421, 64
        %v1426 = vpop.permute.xlu0 %1425
        %1427 = vrot.lane.b32.xlu0 %v1422, 64
        %v1428 = vpop.permute.xlu0 %1427
        %v1429 = vsel %vm454, %v1426, %v1428
        %v1433 = vmul.f32 %v1400, %v1426
        %v1434 = vmul.f32 %v1401, %v1429
        %v1435 = vmul.f32 %v1402, %v1428
        %v1436 = vmul.f32 %v1403, %v1426
        %v1437 = vmul.f32 %v1404, %v1429
        %v1438 = vmul.f32 %v1405, %v1428
        %1445 = vrot.lane.b32.xlu0 %v1433, 64
        %v1446 = vpop.permute.xlu0 %1445
        %1447 = vrot.lane.b32.xlu0 %v1434, 64
        %v1448 = vpop.permute.xlu0 %1447
        %1449 = vrot.lane.b32.xlu0 %v1435, 64
        %v1450 = vpop.permute.xlu0 %1449
        %1451 = vrot.lane.b32.xlu0 %v1436, 64
        %v1452 = vpop.permute.xlu0 %1451
        %1453 = vrot.lane.b32.xlu0 %v1437, 64
        %v1454 = vpop.permute.xlu0 %1453
        %1455 = vrot.lane.b32.xlu0 %v1438, 64
        %v1456 = vpop.permute.xlu0 %1455
        %v1457 = vsel %vm454, %v1446, %v1448
        %v1458 = vsel %vm454, %v1448, %v1450
        %v1459 = vsel %vm454, %v1452, %v1454
        %v1460 = vsel %vm454, %v1454, %v1456
        %v1465 = vadd.f32 %v1413, %v1457
        %v1466 = vadd.f32 %v1414, %v1458
        %v1467 = vadd.f32 %v1415, %v1459
        %v1468 = vadd.f32 %v1416, %v1460
        %v1469 = vperm.slane %v1397, 2
        %v1470 = vperm.slane %v1397, 6
        %v1473 = vperm.slane %v1469, 2
        %v1474 = vperm.slane %v1470, 2
        %v1475 = vmul.f32 %v1401, %v1473
        %v1476 = vmul.f32 %v1402, %v1474
        %v1477 = vmul.f32 %v1404, %v1473
        %v1478 = vmul.f32 %v1405, %v1474
        %v1479 = vadd.f32 %v1465, %v1475
        %v1480 = vadd.f32 %v1466, %v1476
        %v1481 = vadd.f32 %v1467, %v1477
        %v1482 = vadd.f32 %v1468, %v1478
        %v1484 = vperm.slane %v1398, 0
        %v1485 = vperm.slane %v1398, 4
        %v1488 = vperm.slane %v1484, 0
        %v1489 = vperm.slane %v1485, 0
        %v1490 = vmul.f32 %v713, %v1488
        %v1491 = vmul.f32 %v714, %v1489
        %v1492 = vmul.f32 %v716, %v1488
        %v1493 = vmul.f32 %v717, %v1489
        %v1494 = vmul.f32 %v719, %v1488
        %v1495 = vmul.f32 %v720, %v1489
        %v1496 = vmul.f32 %v722, %v1488
        %v1497 = vmul.f32 %v723, %v1489
        %v1506 = vrot.slane %v1490, 2
        %v1507 = vrot.slane %v1492, 2
        %v1508 = vsel %vm1090, %v1506, %v1507
        %v1509 = vrot.slane %v1491, 2
        %v1510 = vrot.slane %v1493, 2
        %v1511 = vsel %vm1090, %v1509, %v1510
        %v1512 = vrot.slane %v1494, 2
        %v1513 = vrot.slane %v1496, 2
        %v1514 = vsel %vm1090, %v1512, %v1513
        %v1515 = vrot.slane %v1495, 2
        %v1516 = vrot.slane %v1497, 2
        %v1517 = vsel %vm1090, %v1515, %v1516
        %v1522 = vadd.f32 %v1479, %v1508
        %v1523 = vadd.f32 %v1480, %v1511
        %v1524 = vadd.f32 %v1481, %v1514
        %v1525 = vadd.f32 %v1482, %v1517
        %v1526 = vperm.slane %v1398, 1
        %v1527 = vperm.slane %v1398, 5
        %v1530 = vperm.slane %v1526, 1
        %v1531 = vperm.slane %v1527, 1
        %1534 = vrot.lane.b32.xlu0 %v1530, 64
        %v1535 = vpop.permute.xlu0 %1534
        %1536 = vrot.lane.b32.xlu0 %v1531, 64
        %v1537 = vpop.permute.xlu0 %1536
        %v1538 = vsel %vm454, %v1535, %v1537
        %v1542 = vmul.f32 %v713, %v1535
        %v1543 = vmul.f32 %v714, %v1538
        %v1544 = vmul.f32 %v715, %v1537
        %v1545 = vmul.f32 %v716, %v1535
        %v1546 = vmul.f32 %v717, %v1538
        %v1547 = vmul.f32 %v718, %v1537
        %v1548 = vmul.f32 %v719, %v1535
        %v1549 = vmul.f32 %v720, %v1538
        %v1550 = vmul.f32 %v721, %v1537
        %v1551 = vmul.f32 %v722, %v1535
        %v1552 = vmul.f32 %v723, %v1538
        %v1553 = vmul.f32 %v724, %v1537
        %v1566 = vrot.slane %v1542, 2
        %v1567 = vrot.slane %v1545, 2
        %v1568 = vsel %vm1090, %v1566, %v1567
        %v1569 = vrot.slane %v1543, 2
        %v1570 = vrot.slane %v1546, 2
        %v1571 = vsel %vm1090, %v1569, %v1570
        %v1572 = vrot.slane %v1544, 2
        %v1573 = vrot.slane %v1547, 2
        %v1574 = vsel %vm1090, %v1572, %v1573
        %v1575 = vrot.slane %v1548, 2
        %v1576 = vrot.slane %v1551, 2
        %v1577 = vsel %vm1090, %v1575, %v1576
        %v1578 = vrot.slane %v1549, 2
        %v1579 = vrot.slane %v1552, 2
        %v1580 = vsel %vm1090, %v1578, %v1579
        %v1581 = vrot.slane %v1550, 2
        %v1582 = vrot.slane %v1553, 2
        %v1583 = vsel %vm1090, %v1581, %v1582
        %1584 = vrot.lane.b32.xlu0 %v1568, 64
        %v1585 = vpop.permute.xlu0 %1584
        %1586 = vrot.lane.b32.xlu0 %v1571, 64
        %v1587 = vpop.permute.xlu0 %1586
        %1588 = vrot.lane.b32.xlu0 %v1574, 64
        %v1589 = vpop.permute.xlu0 %1588
        %1590 = vrot.lane.b32.xlu0 %v1577, 64
        %v1591 = vpop.permute.xlu0 %1590
        %1592 = vrot.lane.b32.xlu0 %v1580, 64
        %v1593 = vpop.permute.xlu0 %1592
        %1594 = vrot.lane.b32.xlu0 %v1583, 64
        %v1595 = vpop.permute.xlu0 %1594
        %v1596 = vsel %vm454, %v1585, %v1587
        %v1597 = vsel %vm454, %v1587, %v1589
        %v1598 = vsel %vm454, %v1591, %v1593
        %v1599 = vsel %vm454, %v1593, %v1595
        %v1604 = vadd.f32 %v1522, %v1596
        %v1605 = vadd.f32 %v1523, %v1597
        %v1606 = vadd.f32 %v1524, %v1598
        %v1607 = vadd.f32 %v1525, %v1599
        %v1608 = vperm.slane %v1398, 2
        %v1609 = vperm.slane %v1398, 6
        %v1612 = vperm.slane %v1608, 2
        %v1613 = vperm.slane %v1609, 2
        %v1614 = vmul.f32 %v714, %v1612
        %v1615 = vmul.f32 %v715, %v1613
        %v1616 = vmul.f32 %v717, %v1612
        %v1617 = vmul.f32 %v718, %v1613
        %v1618 = vmul.f32 %v720, %v1612
        %v1619 = vmul.f32 %v721, %v1613
        %v1620 = vmul.f32 %v723, %v1612
        %v1621 = vmul.f32 %v724, %v1613
        %v1630 = vrot.slane %v1614, 2
        %v1631 = vrot.slane %v1616, 2
        %v1632 = vsel %vm1090, %v1630, %v1631
        %v1633 = vrot.slane %v1615, 2
        %v1634 = vrot.slane %v1617, 2
        %v1635 = vsel %vm1090, %v1633, %v1634
        %v1636 = vrot.slane %v1618, 2
        %v1637 = vrot.slane %v1620, 2
        %v1638 = vsel %vm1090, %v1636, %v1637
        %v1639 = vrot.slane %v1619, 2
        %v1640 = vrot.slane %v1621, 2
        %v1641 = vsel %vm1090, %v1639, %v1640
        %v1646 = vadd.f32 %v1604, %v1632
        %v1647 = vadd.f32 %v1605, %v1635
        %v1648 = vadd.f32 %v1606, %v1638
        %v1649 = vadd.f32 %v1607, %v1641
        %v1650 = vld [vmem:[#allocation2] sm:$0xf0]
        %v1651 = vld [vmem:[#allocation2 + $0x8] sm:$0xf0]
        %v1652 = vld [vmem:[#allocation2 + $0x10] sm:$0xf0]
        %v1653 = vld [vmem:[#allocation2 + $0x18] sm:$0xf]
        %v1654 = vld [vmem:[#allocation2 + $0x20] sm:$0xf]
        %v1655 = vld [vmem:[#allocation2 + $0x28] sm:$0xf]
        %v1656 = vld [vmem:[#allocation2 + $0x30] sm:$0xf0]
        %v1657 = vld [vmem:[#allocation2 + $0x38] sm:$0xf0]
        %v1658 = vld [vmem:[#allocation2 + $0x40] sm:$0xf0]
        %v1659 = vld [vmem:[#allocation2 + $0x48] sm:$0xf]
        %v1660 = vld [vmem:[#allocation2 + $0x50] sm:$0xf]
        %v1661 = vld [vmem:[#allocation2 + $0x58] sm:$0xf]
        %v1663 = vperm.slane %v1399, 0
        %v1664 = vperm.slane %v1399, 4
        %v1667 = vperm.slane %v1663, 0
        %v1668 = vperm.slane %v1664, 0
        %v1669 = vmul.f32 %v1650, %v1667
        %v1670 = vmul.f32 %v1651, %v1668
        %v1671 = vmul.f32 %v1653, %v1667
        %v1672 = vmul.f32 %v1654, %v1668
        %v1673 = vmul.f32 %v1656, %v1667
        %v1674 = vmul.f32 %v1657, %v1668
        %v1675 = vmul.f32 %v1659, %v1667
        %v1676 = vmul.f32 %v1660, %v1668
        %vm1685 = vcmask 1043456
        %v1686 = vrot.slane %v1669, 4
        %v1687 = vrot.slane %v1671, 4
        %v1688 = vsel %vm1685, %v1686, %v1687
        %v1689 = vrot.slane %v1670, 4
        %v1690 = vrot.slane %v1672, 4
        %v1691 = vsel %vm1685, %v1689, %v1690
        %v1692 = vrot.slane %v1673, 4
        %v1693 = vrot.slane %v1675, 4
        %v1694 = vsel %vm1685, %v1692, %v1693
        %v1695 = vrot.slane %v1674, 4
        %v1696 = vrot.slane %v1676, 4
        %v1697 = vsel %vm1685, %v1695, %v1696
        %v1702 = vadd.f32 %v1646, %v1688
        %v1703 = vadd.f32 %v1647, %v1691
        %v1704 = vadd.f32 %v1648, %v1694
        %v1705 = vadd.f32 %v1649, %v1697
        %v1706 = vperm.slane %v1399, 1
        %v1707 = vperm.slane %v1399, 5
        %v1710 = vperm.slane %v1706, 1
        %v1711 = vperm.slane %v1707, 1
        %1714 = vrot.lane.b32.xlu0 %v1710, 64
        %v1715 = vpop.permute.xlu0 %1714
        %1716 = vrot.lane.b32.xlu0 %v1711, 64
        %v1717 = vpop.permute.xlu0 %1716
        %v1718 = vsel %vm454, %v1715, %v1717
        %v1722 = vmul.f32 %v1650, %v1715
        %v1723 = vmul.f32 %v1651, %v1718
        %v1724 = vmul.f32 %v1652, %v1717
        %v1725 = vmul.f32 %v1653, %v1715
        %v1726 = vmul.f32 %v1654, %v1718
        %v1727 = vmul.f32 %v1655, %v1717
        %v1728 = vmul.f32 %v1656, %v1715
        %v1729 = vmul.f32 %v1657, %v1718
        %v1730 = vmul.f32 %v1658, %v1717
        %v1731 = vmul.f32 %v1659, %v1715
        %v1732 = vmul.f32 %v1660, %v1718
        %v1733 = vmul.f32 %v1661, %v1717
        %v1746 = vrot.slane %v1722, 4
        %v1747 = vrot.slane %v1725, 4
        %v1748 = vsel %vm1685, %v1746, %v1747
        %v1749 = vrot.slane %v1723, 4
        %v1750 = vrot.slane %v1726, 4
        %v1751 = vsel %vm1685, %v1749, %v1750
        %v1752 = vrot.slane %v1724, 4
        %v1753 = vrot.slane %v1727, 4
        %v1754 = vsel %vm1685, %v1752, %v1753
        %v1755 = vrot.slane %v1728, 4
        %v1756 = vrot.slane %v1731, 4
        %v1757 = vsel %vm1685, %v1755, %v1756
        %v1758 = vrot.slane %v1729, 4
        %v1759 = vrot.slane %v1732, 4
        %v1760 = vsel %vm1685, %v1758, %v1759
        %v1761 = vrot.slane %v1730, 4
        %v1762 = vrot.slane %v1733, 4
        %v1763 = vsel %vm1685, %v1761, %v1762
        %1764 = vrot.lane.b32.xlu0 %v1748, 64
        %v1765 = vpop.permute.xlu0 %1764
        %1766 = vrot.lane.b32.xlu0 %v1751, 64
        %v1767 = vpop.permute.xlu0 %1766
        %1768 = vrot.lane.b32.xlu0 %v1754, 64
        %v1769 = vpop.permute.xlu0 %1768
        %1770 = vrot.lane.b32.xlu0 %v1757, 64
        %v1771 = vpop.permute.xlu0 %1770
        %1772 = vrot.lane.b32.xlu0 %v1760, 64
        %v1773 = vpop.permute.xlu0 %1772
        %1774 = vrot.lane.b32.xlu0 %v1763, 64
        %v1775 = vpop.permute.xlu0 %1774
        %v1776 = vsel %vm454, %v1765, %v1767
        %v1777 = vsel %vm454, %v1767, %v1769
        %v1778 = vsel %vm454, %v1771, %v1773
        %v1779 = vsel %vm454, %v1773, %v1775
        %v1784 = vadd.f32 %v1702, %v1776
        %v1785 = vadd.f32 %v1703, %v1777
        %v1786 = vadd.f32 %v1704, %v1778
        %v1787 = vadd.f32 %v1705, %v1779
        %v1788 = vperm.slane %v1399, 2
        %v1789 = vperm.slane %v1399, 6
        %v1792 = vperm.slane %v1788, 2
        %v1793 = vperm.slane %v1789, 2
        %v1794 = vmul.f32 %v1651, %v1792
        %v1795 = vmul.f32 %v1652, %v1793
        %v1796 = vmul.f32 %v1654, %v1792
        %v1797 = vmul.f32 %v1655, %v1793
        %v1798 = vmul.f32 %v1657, %v1792
        %v1799 = vmul.f32 %v1658, %v1793
        %v1800 = vmul.f32 %v1660, %v1792
        %v1801 = vmul.f32 %v1661, %v1793
        %v1810 = vrot.slane %v1794, 4
        %v1811 = vrot.slane %v1796, 4
        %v1812 = vsel %vm1685, %v1810, %v1811
        %v1813 = vrot.slane %v1795, 4
        %v1814 = vrot.slane %v1797, 4
        %v1815 = vsel %vm1685, %v1813, %v1814
        %v1816 = vrot.slane %v1798, 4
        %v1817 = vrot.slane %v1800, 4
        %v1818 = vsel %vm1685, %v1816, %v1817
        %v1819 = vrot.slane %v1799, 4
        %v1820 = vrot.slane %v1801, 4
        %v1821 = vsel %vm1685, %v1819, %v1820
        %v1826 = vadd.f32 %v1784, %v1812
        %v1827 = vadd.f32 %v1785, %v1815
        %v1828 = vadd.f32 %v1786, %v1818
        %v1829 = vadd.f32 %v1787, %v1821
        %v1830 = vld [vmem:[#allocation9] sm:$0x3]
        %v1832 = vperm.slane %v1830, 0
        %v1833 = vperm.slane %v1830, 1
        %v1836 = vadd.f32 %v1826, %v1832
        %v1837 = vadd.f32 %v1827, %v1833
        %v1838 = vadd.f32 %v1828, %v1832
        %v1839 = vadd.f32 %v1829, %v1833
        %v1840 = vmax.f32 %v1836, 0.0
        %v1841 = vmax.f32 %v1837, 0.0
        %v1842 = vmax.f32 %v1838, 0.0
        %v1843 = vmax.f32 %v1839, 0.0
        %v1848 = vrot.slane %v1840, 7
        %v1849 = vrot.slane %v1841, 7
        %v1850 = vrot.slane %v1842, 7
        %v1851 = vrot.slane %v1843, 7
        %1852 = vrot.lane.b32.xlu0 %v1848, 32
        %v1853 = vpop.permute.xlu0 %1852
        %1854 = vrot.lane.b32.xlu0 %v1849, 32
        %v1855 = vpop.permute.xlu0 %1854
        %1856 = vrot.lane.b32.xlu0 %v1850, 32
        %v1857 = vpop.permute.xlu0 %1856
        %1858 = vrot.lane.b32.xlu0 %v1851, 32
        %v1859 = vpop.permute.xlu0 %1858
        %v1860 = vsel %vm503, %v1853, %v1855
        %v1861 = vsel %vm503, %v1857, %v1859
        %v1868 = vadd.f32 %v1385, %v1853
        %v1869 = vadd.f32 %v1386, %v1860
        %v1870 = vadd.f32 %v1387, %v1855
        %v1871 = vadd.f32 %v1388, %v1853
        %v1872 = vadd.f32 %v1389, %v1860
        %v1873 = vadd.f32 %v1390, %v1855
        %v1874 = vadd.f32 %v1391, %v1857
        %v1875 = vadd.f32 %v1392, %v1861
        %v1876 = vadd.f32 %v1393, %v1859
        %v1877 = vadd.f32 %v1394, %v1857
        %v1878 = vadd.f32 %v1395, %v1861
        %v1879 = vadd.f32 %v1396, %v1859
        %v1892 = vrot.slane %v1868, 1
        %v1893 = vrot.slane %v1871, 1
        %v1894 = vsel %vm766, %v1892, %v1893
        %v1895 = vrot.slane %v1869, 1
        %v1896 = vrot.slane %v1872, 1
        %v1897 = vsel %vm766, %v1895, %v1896
        %v1898 = vrot.slane %v1870, 1
        %v1899 = vrot.slane %v1873, 1
        %v1900 = vsel %vm766, %v1898, %v1899
        %v1901 = vrot.slane %v1874, 1
        %v1902 = vrot.slane %v1877, 1
        %v1903 = vsel %vm766, %v1901, %v1902
        %v1904 = vrot.slane %v1875, 1
        %v1905 = vrot.slane %v1878, 1
        %v1906 = vsel %vm766, %v1904, %v1905
        %v1907 = vrot.slane %v1876, 1
        %v1908 = vrot.slane %v1879, 1
        %v1909 = vsel %vm766, %v1907, %v1908
        %vm1916 = vcmask 1047808
        %v1917 = vsel %vm1916, %v1894, 0.0
        %v1918 = vrot.slane %v1917, 4
        %v1919 = vadd.f32 %v1917, %v1918
        %v1920 = vrot.slane %v1919, 2
        %v1921 = vadd.f32 %v1919, %v1920
        %v1922 = vrot.slane %v1921, 1
        %v1923 = vadd.f32 %v1921, %v1922
        %v1924 = vrot.slane %v1897, 4
        %v1925 = vadd.f32 %v1897, %v1924
        %v1926 = vrot.slane %v1925, 2
        %v1927 = vadd.f32 %v1925, %v1926
        %v1928 = vrot.slane %v1927, 1
        %v1929 = vadd.f32 %v1927, %v1928
        %v1930 = vsel %vm503, %v1900, 0.0
        %v1931 = vrot.slane %v1930, 4
        %v1932 = vadd.f32 %v1930, %v1931
        %v1933 = vrot.slane %v1932, 2
        %v1934 = vadd.f32 %v1932, %v1933
        %v1935 = vrot.slane %v1934, 1
        %v1936 = vadd.f32 %v1934, %v1935
        %v1937 = vsel %vm1916, %v1903, 0.0
        %v1938 = vrot.slane %v1937, 4
        %v1939 = vadd.f32 %v1937, %v1938
        %v1940 = vrot.slane %v1939, 2
        %v1941 = vadd.f32 %v1939, %v1940
        %v1942 = vrot.slane %v1941, 1
        %v1943 = vadd.f32 %v1941, %v1942
        %v1944 = vrot.slane %v1906, 4
        %v1945 = vadd.f32 %v1906, %v1944
        %v1946 = vrot.slane %v1945, 2
        %v1947 = vadd.f32 %v1945, %v1946
        %v1948 = vrot.slane %v1947, 1
        %v1949 = vadd.f32 %v1947, %v1948
        %v1950 = vsel %vm503, %v1909, 0.0
        %v1951 = vrot.slane %v1950, 4
        %v1952 = vadd.f32 %v1950, %v1951
        %v1953 = vrot.slane %v1952, 2
        %v1954 = vadd.f32 %v1952, %v1953
        %v1955 = vrot.slane %v1954, 1
        %v1956 = vadd.f32 %v1954, %v1955
        %1959 = vrot.lane.b32.xlu0 %v1923, 96
        %v1960 = vpop.permute.xlu0 %1959
        %1961 = vrot.lane.b32.xlu0 %v1943, 96
        %v1962 = vpop.permute.xlu0 %1961
        %v1965 = vadd.f32 %v1923, %v1960
        %v1966 = vadd.f32 %v1943, %v1962
        %1967 = vrot.lane.b32.xlu0 %v1923, 64
        %v1968 = vpop.permute.xlu0 %1967
        %1969 = vrot.lane.b32.xlu0 %v1943, 64
        %v1970 = vpop.permute.xlu0 %1969
        %v1973 = vadd.f32 %v1965, %v1968
        %v1974 = vadd.f32 %v1966, %v1970
        %1977 = vrot.lane.b32.xlu0 %v1929, 32
        %v1978 = vpop.permute.xlu0 %1977
        %1979 = vrot.lane.b32.xlu0 %v1949, 32
        %v1980 = vpop.permute.xlu0 %1979
        %v1983 = vadd.f32 %v1973, %v1978
        %v1984 = vadd.f32 %v1974, %v1980
        %v1985 = vadd.f32 %v1983, %v1929
        %v1986 = vadd.f32 %v1984, %v1949
        %1987 = vrot.lane.b32.xlu0 %v1929, 96
        %v1988 = vpop.permute.xlu0 %1987
        %1989 = vrot.lane.b32.xlu0 %v1949, 96
        %v1990 = vpop.permute.xlu0 %1989
        %v1993 = vadd.f32 %v1985, %v1988
        %v1994 = vadd.f32 %v1986, %v1990
        %1995 = vrot.lane.b32.xlu0 %v1929, 64
        %v1996 = vpop.permute.xlu0 %1995
        %1997 = vrot.lane.b32.xlu0 %v1949, 64
        %v1998 = vpop.permute.xlu0 %1997
        %v2001 = vadd.f32 %v1993, %v1996
        %v2002 = vadd.f32 %v1994, %v1998
        %2005 = vrot.lane.b32.xlu0 %v1936, 32
        %v2006 = vpop.permute.xlu0 %2005
        %2007 = vrot.lane.b32.xlu0 %v1956, 32
        %v2008 = vpop.permute.xlu0 %2007
        %v2011 = vadd.f32 %v2001, %v2006
        %v2012 = vadd.f32 %v2002, %v2008
        %v2013 = vmul.f32 %v2011, 0.015625
        %v2014 = vmul.f32 %v2012, 0.015625
        %v2015 = vld [vmem:[#allocation11] sm:$0xff]
        %v2016 = vld [vmem:[#allocation11 + $0x8] sm:$0xff]
        %v2017 = vld [vmem:[#allocation11 + $0x10] sm:$0xff]
        %v2018 = vld [vmem:[#allocation11 + $0x18] sm:$0xff]
        %v2019 = vld [vmem:[%s6] sm:$0x1]
        %v2021 = vperm.slane %v2019, 0
        %v2025 = vrot.slane %v2014, 7
        %vm2026 = vcmask 1041409
        %v2027 = vsel %vm2026, %v2025, %v2013
        %2028 = vrot.lane.b32.xlu0 %v2027, 96
        %v2029 = vpop.permute.xlu0 %2028
        %v2030 = vsel %vm503, %v2029, 0
        %2032 = vmatpush.msra.mxu0 0.0
        %2033 = vmatpush.msra.mxu0 0.0
        %2034 = vmatpush.msra.mxu0 0.0
        %2035 = vmatpush.msra.mxu0 0.0
        %2036 = vmatpush.msra.mxu0 0.0
        %2037 = vmatpush.msra.mxu0 0.0
        %2038 = vmatpush.msra.mxu0 0.0
        %2039 = vmatpush.msra.mxu0 0.0
        %2040 = vmatpush.msra.mxu0 0.0
        %2041 = vmatpush.msra.mxu0 0.0
        %2042 = vmatpush.msra.mxu0 0.0
        %2043 = vmatpush.msra.mxu0 0.0
        %2044 = vmatpush.msra.mxu0 %v2018
        %2045 = vmatpush.msra.mxu0 %v2017
        %2046 = vmatpush.msra.mxu0 %v2016
        %2047 = vmatpush.msra.mxu0 %v2015
        %2048 = vmatmul.f32.gmra.mxu0 %v2030
        %v2049 = vpop.f32.mrf.mxu0
        %v2050 = vadd.f32 %v2021, %v2049
        %2051 = vdwg.mxu0
        %v2052 = vmax.f32 %v2050, 0.0
        %v2053 = vld [vmem:[#allocation12] sm:$0xff]
        %v2054 = vld [vmem:[#allocation12 + $0x8] sm:$0xff]
        %v2055 = vld [vmem:[#allocation12 + $0x10] sm:$0xff]
        %v2056 = vld [vmem:[#allocation12 + $0x18] sm:$0xff]
        %v2058 = vsel %vm503, %v2052, 0
        %2060 = vmatpush.msra.mxu0 0.0
        %2061 = vmatpush.msra.mxu0 0.0
        %2062 = vmatpush.msra.mxu0 0.0
        %2063 = vmatpush.msra.mxu0 0.0
        %2064 = vmatpush.msra.mxu0 0.0
        %2065 = vmatpush.msra.mxu0 0.0
        %2066 = vmatpush.msra.mxu0 0.0
        %2067 = vmatpush.msra.mxu0 0.0
        %2068 = vmatpush.msra.mxu0 0.0
        %2069 = vmatpush.msra.mxu0 0.0
        %2070 = vmatpush.msra.mxu0 0.0
        %2071 = vmatpush.msra.mxu0 0.0
        %2072 = vmatpush.msra.mxu0 %v2056
        %2073 = vmatpush.msra.mxu0 %v2055
        %2074 = vmatpush.msra.mxu0 %v2054
        %2075 = vmatpush.msra.mxu0 %v2053
        %2076 = vmatmul.f32.gmra.mxu0 %v2058
        %v2077 = vpop.f32.mrf.mxu0
        %v2078 = vadd.f32 0.0, %v2077
        %2079 = vdwg.mxu0
        %2081 = vrot.lane.b32.xlu0 %v2078, 32
        %v2082 = vpop.permute.xlu0 %2081
        %v2084 = vsub.f32 %v2078, %v2082
        %v2085 = vmul.f32 %v2084, 1.442695
        %v2086 = vpow.pop %v2085
        %v2087 = vadd.f32 %v2086, 1.0
        %v2088 = vrcp.pop %v2087
        %v2089 = vmul.f32 %v2087, %v2088
        %v2090 = vsub.f32 1.0, %v2089
        %v2091 = vmul.f32 %v2088, %v2090
        %v2092 = vadd.f32 %v2088, %v2091
        %vm2093 = vweird.f32 %v2087
        %vm2094 = vweird.f32 %v2088
        %vm2095 = vmor %vm2093, %vm2094
        %v2096 = vsel %vm2095, %v2088, %v2092
        %v2097 = vand.u32 2147483647, %v2087
        %vm2098 = vcmp.eq.f32.partialorder %v2097, 8.507059e+37
        %v2099 = vand.u32 %v2087, 2147483648
        %v2100 = vor.u32 1.1754944e-38, %v2099
        %v2101 = vsel %vm2098, %v2100, %v2096
        %v2102 = vmul.f32 1.0, %v2101
        %2104 = vrot.lane.b32.xlu0 %v2102, 96
        %v2105 = vpop.permute.xlu0 %2104
        %2107 = vrot.lane.b32.xlu0 %v2102, 32
        %v2108 = vpop.permute.xlu0 %2107
        %2110 = vrot.lane.b32.xlu0 %v2102, 64
        %v2111 = vpop.permute.xlu0 %2110
        %v2113 = vsel %vm503, %v2105, %v2102
        %v2114 = vsel %vm454, %v2113, %v2108
        %v2115 = vsel %vm584, %v2114, %v2111
        %v2117 = vrot.slane %v2115, 7
        %vm2118 = vcmask 1040384
        %v2119 = vsel %vm2118, %v2115, %v2117
        %v2120 = vsel %vm2026, %v2115, %v2117
        %v2121 = vrot.slane %v2120, 1
        %v2122 = vsub.f32 %v1385, %v1853
        %v2123 = vsub.f32 %v1386, %v1860
        %v2124 = vsub.f32 %v1387, %v1855
        %v2125 = vsub.f32 %v1388, %v1853
        %v2126 = vsub.f32 %v1389, %v1860
        %v2127 = vsub.f32 %v1390, %v1855
        %v2128 = vsub.f32 %v1391, %v1857
        %v2129 = vsub.f32 %v1392, %v1861
        %v2130 = vsub.f32 %v1393, %v1859
        %v2131 = vsub.f32 %v1394, %v1857
        %v2132 = vsub.f32 %v1395, %v1861
        %v2133 = vsub.f32 %v1396, %v1859
        %v2134 = vperm.slane %v2119, 0
        %v2135 = vperm.slane %v2119, 1
        %v2136 = vperm.slane %v2121, 0
        %v2137 = vperm.slane %v2121, 1
        %v2154 = vrot.slane %v2122, 1
        %v2155 = vrot.slane %v2125, 1
        %v2156 = vsel %vm766, %v2154, %v2155
        %v2157 = vrot.slane %v2123, 1
        %v2158 = vrot.slane %v2126, 1
        %v2159 = vsel %vm766, %v2157, %v2158
        %v2160 = vrot.slane %v2124, 1
        %v2161 = vrot.slane %v2127, 1
        %v2162 = vsel %vm766, %v2160, %v2161
        %v2163 = vrot.slane %v2128, 1
        %v2164 = vrot.slane %v2131, 1
        %v2165 = vsel %vm766, %v2163, %v2164
        %v2166 = vrot.slane %v2129, 1
        %v2167 = vrot.slane %v2132, 1
        %v2168 = vsel %vm766, %v2166, %v2167
        %v2169 = vrot.slane %v2130, 1
        %v2170 = vrot.slane %v2133, 1
        %v2171 = vsel %vm766, %v2169, %v2170
        %2172 = vrot.lane.b32.xlu0 %v2156, 96
        %v2173 = vpop.permute.xlu0 %2172
        %2174 = vrot.lane.b32.xlu0 %v2159, 96
        %v2175 = vpop.permute.xlu0 %2174
        %2176 = vrot.lane.b32.xlu0 %v2162, 96
        %v2177 = vpop.permute.xlu0 %2176
        %2178 = vrot.lane.b32.xlu0 %v2165, 96
        %v2179 = vpop.permute.xlu0 %2178
        %2180 = vrot.lane.b32.xlu0 %v2168, 96
        %v2181 = vpop.permute.xlu0 %2180
        %2182 = vrot.lane.b32.xlu0 %v2171, 96
        %v2183 = vpop.permute.xlu0 %2182
        %v2184 = vsel %vm584, %v2173, %v2175
        %v2185 = vsel %vm584, %v2175, %v2177
        %v2186 = vsel %vm584, %v2179, %v2181
        %v2187 = vsel %vm584, %v2181, %v2183
        %v2192 = vmul.f32 %v2134, %v2184
        %v2193 = vmul.f32 %v2135, %v2185
        %v2194 = vmul.f32 %v2136, %v2186
        %v2195 = vmul.f32 %v2137, %v2187
        %v2196 = vadd.f32 %v1840, %v2192
        %v2197 = vadd.f32 %v1841, %v2193
        %v2198 = vadd.f32 %v1842, %v2194
        %v2199 = vadd.f32 %v1843, %v2195
        %2200 = vst [vmem:[%s407] sm:$0xff] %v2196
        %2201 = vst [vmem:[%s407 + $0x8] sm:$0xff] %v2197
        %2202 = vst [vmem:[%s407 + $0x10] sm:$0xff] %v2198
        %2203 = vst [vmem:[%s407 + $0x18] sm:$0xff] %v2199
        %s2204 = sand.u32 %s209, 1
        %s2205 = scalar_lea.sflag [#allocation5], %s2204
        %s2206 = sand.u32 %s209, 1
        %s2207 = smul.addr %s2206, 32
        %s2208 = scalar_lea.vmem [#allocation14], %s2207
        // Predicated region
        $region77: #{tpu_custom_call.1} parent=51 // pred_check
          %p2209 = pneg %p219
        $region78: #{tpu_custom_call.1} parent=51 // pred_check_branch
          %2211 = sbr.rel (%p2209) target = $region80
        $region79: #{tpu_custom_call.1} parent=51 // pred_region
          %s2212 = smul.u32 2, %s28
          %2214 = vsyncadd %s2205, 0
          %s2215 = smul.addr %s2212, 2
          %s2216 = smul.addr %s2215, 8
          %s2217 = scalar_lea.hbm %s8, %s2216
          %s2218 = sshll.u32 %s2208, 4
          %s2219 = int_to_ptr.vmem [resolvable:$true] %s2218
          %s2220 = sshll.u32 %s2217, 4
          %s2221 = int_to_ptr.hbm [resolvable:$true] %s2220
          %2226 = dma.vmem_to_hbm [thread:$0]  %s2219, 512, %s2221, %s2205, 256, 256, 16
        $region80: #{tpu_custom_call.1} parent=51 // pred_fallthru
          _
      $region52: #{tpu_custom_call.1} parent=5 // pred_fallthru
        _
      %p2227 = scmp.le.s32.totalorder 2, %s23
      // Predicated region
      $region81: #{tpu_custom_call.1} parent=5 // pred_check
        %p2228 = pneg %p2227
      $region82: #{tpu_custom_call.1} parent=5 // pred_check_branch
        %2230 = sbr.rel (%p2228) target = $region84
      $region83: #{tpu_custom_call.1} parent=5 // pred_region
        %s2231 = ssub.s32 %s23, 2
        // Predicated region
        $region85: #{tpu_custom_call.1} parent=83 // pred_check
          %p2232 = pneg %p225
        $region86: #{tpu_custom_call.1} parent=83 // pred_check_branch
          %2234 = sbr.rel (%p2232) target = $region88
        $region87: #{tpu_custom_call.1} parent=83 // pred_region
          %s2235 = sand.u32 %s210, 1
          %s2236 = scalar_lea.sflag [#allocation5], %s2235
          %s2237 = sand.u32 %s210, 1
          %s2238 = smul.addr %s2237, 32
          %s2239 = scalar_lea.vmem [#allocation14], %s2238
          %2241 = dma.done %s2236, 512
        $region88: #{tpu_custom_call.1} parent=83 // pred_fallthru
          _
      $region84: #{tpu_custom_call.1} parent=5 // pred_fallthru
        _
    $region6: #{tpu_custom_call.1} parent=1 // loop_footer
      %s27 = sadd.s32 1, %s23
    $region7: #{tpu_custom_call.1} parent=1 // loop_footer_branch
      %22 = sbr.rel target = $region3
    $region8: #{tpu_custom_call.1} parent=1 // loop_exit
      _
    %2242 = vsyncpa [#allocation4], 1
    %s2243 = scalar_lea.sflag [#allocation4], 1
    %2244 = vsyncpa %s2243, 1
    %2245 = vsyncpa [#allocation7], 1
    %2246 = vsyncpa [#allocation10], 1
    %2247 = vsyncpa [#allocation13], 1
    %2248 = vsyncpa [#allocation5], 1
    %s2249 = scalar_lea.sflag [#allocation5], 1
    %2250 = vsyncpa %s2249, 1

</llo_original>
